<compile_context>
chip_gen: v6e
topology: v6e:2x2x1
jax: 0.10.0
libtpu: 0.0.40
codegen_flags: <defaults>
</compile_context>

<pallas_src>
import functools
import math

import jax
import jax.numpy as jnp
from jax.experimental import pallas as pl
from jax.experimental.pallas import tpu as pltpu


def _round_up(v, m):
    return (v + m - 1) // m * m


def fused_gcn_kernel(adj_ref, x_ref, params_ref, out_ref, *, num_layers, skip, lane):
    """Whole GCN forward in one kernel.

    adj_ref    : (N, N)       dense adjacency, f32
    x_ref      : (N, LANE)    node features, zero-padded to LANE lanes
    params_ref : packed slab  [W-pieces as (LANE, LANE) blocks] + [bias rows]
                 piece order per layer:
                   layer 0:               W0_T
                   layer i>0, skip=True:  Wa_T (relu half), Wb_T (identity half)
                   layer i>0, skip=False: W_T
                 followed by num_layers bias rows of shape (1, LANE)
    out_ref    : (N, LANE)    lane-dense output; cols [classes:] are zero.
    """
    adj = adj_ref[...]
    x = x_ref[...]

    n_pieces = 1 + (num_layers - 1) * (2 if skip else 1)
    bias_off = n_pieces * lane

    def weight(i):
        # Static slice of the packed slab: zero runtime cost.
        return params_ref[i * lane:(i + 1) * lane, :]

    def bias(i):
        return params_ref[bias_off + i:bias_off + i + 1, :]

    # --- layer 0 ---
    support = jnp.dot(x, weight(0), preferred_element_type=jnp.float32)
    h = jnp.dot(adj, support, preferred_element_type=jnp.float32) + bias(0)

    # --- layers 1 .. num_layers-1 ---
    piece = 1
    for layer in range(1, num_layers):
        r = jnp.maximum(h, 0.0)  # relu of previous pre-activation
        if skip:
            # cat([relu(h), h]) @ W.T  ==  relu(h) @ Wa_T + h @ Wb_T
            support = (jnp.dot(r, weight(piece), preferred_element_type=jnp.float32)
                       + jnp.dot(h, weight(piece + 1), preferred_element_type=jnp.float32))
            piece += 2
        else:
            support = jnp.dot(r, weight(piece), preferred_element_type=jnp.float32)
            piece += 1
        h = jnp.dot(adj, support, preferred_element_type=jnp.float32) + bias(layer)

    # Lane-dense (N, LANE) store; padded columns are exactly zero.
    out_ref[...] = h


def gcn_forward(adj, x, params, skip):
    """Fused GCN forward. params[i] = (W_i [out,in] PyTorch layout, b_i [out])."""
    num_layers = len(params)
    N, nfeat = x.shape
    nhid = params[0][0].shape[0]
    classes = params[-1][0].shape[0]

    # Common lane width: everything padded to a multiple of 128 lanes.
    lane = _round_up(max(nfeat, nhid, classes, 128), 128)

    adj = adj.astype(jnp.float32)
    x_pad = jnp.zeros((N, lane), jnp.float32).at[:, :nfeat].set(x.astype(jnp.float32))

    # --- pack all weights + biases into one slab (one DMA) ---
    pieces = []
    bias_rows = []
    flops = 0
    for i, (w, b) in enumerate(params):
        f_out, f_in = w.shape
        if i == 0 or not skip:
            halves = [jnp.asarray(w.T, jnp.float32)]
        else:
            assert f_in == 2 * nhid, "skip layers expect f_in == 2 * nhid"
            half = f_in // 2
            halves = [jnp.asarray(w[:, :half].T, jnp.float32),   # pairs with relu(h)
                      jnp.asarray(w[:, half:].T, jnp.float32)]   # pairs with h
        for m in halves:
            blk = jnp.zeros((lane, lane), jnp.float32)
            blk = blk.at[:m.shape[0], :m.shape[1]].set(m)
            pieces.append(blk)
        bias_rows.append(
            jnp.zeros((1, lane), jnp.float32).at[0, :f_out].set(b.astype(jnp.float32)))
        flops += 2 * (N * f_in * f_out + N * N * f_out)

    param_slab = jnp.concatenate(pieces + bias_rows, axis=0)

    inputs = [adj, x_pad, param_slab]
    total_bytes = (sum(int(a.size) * a.dtype.itemsize for a in inputs)
                   + N * lane * 4)
    # Explicit VMEM budget (packed inputs + output + headroom), clamped so it
    # is valid on every generation (v7x physical VMEM is 64 MiB).
    vmem_limit = int(min(48 << 20, max(4 << 20, 2 * total_bytes + (1 << 20))))

    vmem_spec = pl.BlockSpec(memory_space=pltpu.MemorySpace.VMEM)
    kernel = functools.partial(fused_gcn_kernel, num_layers=num_layers,
                               skip=skip, lane=lane)

    out_padded = pl.pallas_call(
        kernel,
        out_shape=jax.ShapeDtypeStruct((N, lane), jnp.float32),
        in_specs=[vmem_spec] * len(inputs),
        out_specs=vmem_spec,
        compiler_params=pltpu.CompilerParams(vmem_limit_bytes=vmem_limit),
        cost_estimate=pl.CostEstimate(flops=flops, transcendentals=0,
                                      bytes_accessed=total_bytes),
    )(*inputs)

    # Drop the lane padding (classes=8 << 128) in the wrapper.
    return out_padded[:, :classes]


def init_gcn_params(key, num_layers, nfeat, nhid, classes, skip):
    """Deterministic params matching GCN.__init__ shapes (Linear bias=False,
    GraphConv bias=True)."""
    params = []
    for i in range(num_layers):
        if i == 0:
            f_in, f_out = nfeat, nhid
        elif i < num_layers - 1:
            f_in = nhid * 2 if skip else nhid
            f_out = nhid
        else:
            f_in = nhid * 2 if skip else nhid
            f_out = classes
        key, kw, kb = jax.random.split(key, 3)
        bound_w = 1.0 / math.sqrt(f_in)
        w = jax.random.uniform(kw, (f_out, f_in), jnp.float32,
                               minval=-bound_w, maxval=bound_w)
        bound_b = 1.0 / math.sqrt(f_out)
        b = jax.random.uniform(kb, (f_out,), jnp.float32,
                               minval=-bound_b, maxval=bound_b)
        params.append((w, b))
    return params


if __name__ == "__main__":
    # Small shapes: N=128 nodes, nfeat=32, nhid=32, classes=8,
    # num_layers=3, skip=True, dropout=0.0, batchnorm=False.
    N, NFEAT, NHID, CLASSES = 128, 32, 32, 8
    NUM_LAYERS, SKIP = 3, True

    key = jax.random.PRNGKey(0)
    k_adj, k_x, k_params = jax.random.split(key, 3)

    # Dense "sparse" adjacency: random nonnegative, row-normalized.
    adj_raw = jax.random.uniform(k_adj, (N, N), jnp.float32)
    adj = adj_raw / jnp.sum(adj_raw, axis=-1, keepdims=True)
    x = jax.random.normal(k_x, (N, NFEAT), jnp.float32)

    params = init_gcn_params(k_params, NUM_LAYERS, NFEAT, NHID, CLASSES, SKIP)

    out = gcn_forward(adj, x, params, SKIP)
    out = jax.block_until_ready(out)
    assert out.shape == (N, CLASSES) and out.dtype == jnp.float32

    # Reference check in plain JAX (same math, with the explicit concat).
    def ref_forward(adj, x, params):
        h = x
        for i in range(NUM_LAYERS - 1):
            w, b = params[i]
            x_ = adj @ (h @ w.T) + b
            h = jnp.maximum(x_, 0.0)
            if SKIP:
                h = jnp.concatenate([h, x_], axis=-1)
        w, b = params[-1]
        return adj @ (h @ w.T) + b

    ref = ref_forward(adj, x, params)
    assert jnp.allclose(out, ref, atol=1e-4, rtol=1e-4)

    print("KERNEL_OK")
</pallas_src>

<mosaic_0001>
module attributes {stable_mosaic.version = 11 : i64} {
  func.func @fused_gcn_kernel(%arg0: memref<128x128xf32, #tpu.memory_space<vmem>>, %arg1: memref<128x128xf32, #tpu.memory_space<vmem>>, %arg2: memref<643x128xf32, #tpu.memory_space<vmem>>, %arg3: memref<128x128xf32, #tpu.memory_space<vmem>>) attributes {dimension_semantics = [], scalar_prefetch = 0 : i64, scratch_operands = 0 : i64, tpu.core_type = #tpu.core_type<tc>} {
    %c0 = arith.constant 0 : index
    %c0_0 = arith.constant 0 : index
    %0 = vector.load %arg0[%c0, %c0_0] : memref<128x128xf32, #tpu.memory_space<vmem>>, vector<128x128xf32>
    %c0_1 = arith.constant 0 : index
    %c0_2 = arith.constant 0 : index
    %1 = vector.load %arg1[%c0_1, %c0_2] : memref<128x128xf32, #tpu.memory_space<vmem>>, vector<128x128xf32>
    %c0_3 = arith.constant 0 : index
    %c0_4 = arith.constant 0 : index
    %2 = vector.load %arg2[%c0_3, %c0_4] : memref<643x128xf32, #tpu.memory_space<vmem>>, vector<128x128xf32>
    %cst = arith.constant dense<0.000000e+00> : vector<128x128xf32>
    %3 = tpu.matmul %1, %2, %cst {dimension_numbers = #tpu.dot_dimension_numbers<[1], [0], [0], [1], [0, 0, 1, 1], [], []>} : vector<128x128xf32>, vector<128x128xf32>, vector<128x128xf32> -> vector<128x128xf32>
    %cst_5 = arith.constant dense<0.000000e+00> : vector<128x128xf32>
    %4 = tpu.matmul %0, %3, %cst_5 {dimension_numbers = #tpu.dot_dimension_numbers<[1], [0], [0], [1], [0, 0, 1, 1], [], []>} : vector<128x128xf32>, vector<128x128xf32>, vector<128x128xf32> -> vector<128x128xf32>
    %c640 = arith.constant 640 : index
    %c0_6 = arith.constant 0 : index
    %5 = vector.load %arg2[%c640, %c0_6] : memref<643x128xf32, #tpu.memory_space<vmem>>, vector<1x128xf32>
    %6 = vector.broadcast %5 : vector<1x128xf32> to vector<128x128xf32>
    %7 = arith.addf %4, %6 : vector<128x128xf32>
    %cst_7 = arith.constant 0.000000e+00 : f32
    %8 = vector.broadcast %cst_7 : f32 to vector<128x128xf32>
    %9 = arith.maximumf %7, %8 : vector<128x128xf32>
    %c128 = arith.constant 128 : index
    %c0_8 = arith.constant 0 : index
    %10 = vector.load %arg2[%c128, %c0_8] : memref<643x128xf32, #tpu.memory_space<vmem>>, vector<128x128xf32>
    %cst_9 = arith.constant dense<0.000000e+00> : vector<128x128xf32>
    %11 = tpu.matmul %9, %10, %cst_9 {dimension_numbers = #tpu.dot_dimension_numbers<[1], [0], [0], [1], [0, 0, 1, 1], [], []>} : vector<128x128xf32>, vector<128x128xf32>, vector<128x128xf32> -> vector<128x128xf32>
    %c256 = arith.constant 256 : index
    %c0_10 = arith.constant 0 : index
    %12 = vector.load %arg2[%c256, %c0_10] : memref<643x128xf32, #tpu.memory_space<vmem>>, vector<128x128xf32>
    %cst_11 = arith.constant dense<0.000000e+00> : vector<128x128xf32>
    %13 = tpu.matmul %7, %12, %cst_11 {dimension_numbers = #tpu.dot_dimension_numbers<[1], [0], [0], [1], [0, 0, 1, 1], [], []>} : vector<128x128xf32>, vector<128x128xf32>, vector<128x128xf32> -> vector<128x128xf32>
    %14 = arith.addf %11, %13 : vector<128x128xf32>
    %cst_12 = arith.constant dense<0.000000e+00> : vector<128x128xf32>
    %15 = tpu.matmul %0, %14, %cst_12 {dimension_numbers = #tpu.dot_dimension_numbers<[1], [0], [0], [1], [0, 0, 1, 1], [], []>} : vector<128x128xf32>, vector<128x128xf32>, vector<128x128xf32> -> vector<128x128xf32>
    %c641 = arith.constant 641 : index
    %c0_13 = arith.constant 0 : index
    %16 = vector.load %arg2[%c641, %c0_13] : memref<643x128xf32, #tpu.memory_space<vmem>>, vector<1x128xf32>
    %17 = vector.broadcast %16 : vector<1x128xf32> to vector<128x128xf32>
    %18 = arith.addf %15, %17 : vector<128x128xf32>
    %cst_14 = arith.constant 0.000000e+00 : f32
    %19 = vector.broadcast %cst_14 : f32 to vector<128x128xf32>
    %20 = arith.maximumf %18, %19 : vector<128x128xf32>
    %c384 = arith.constant 384 : index
    %c0_15 = arith.constant 0 : index
    %21 = vector.load %arg2[%c384, %c0_15] : memref<643x128xf32, #tpu.memory_space<vmem>>, vector<128x128xf32>
    %cst_16 = arith.constant dense<0.000000e+00> : vector<128x128xf32>
    %22 = tpu.matmul %20, %21, %cst_16 {dimension_numbers = #tpu.dot_dimension_numbers<[1], [0], [0], [1], [0, 0, 1, 1], [], []>} : vector<128x128xf32>, vector<128x128xf32>, vector<128x128xf32> -> vector<128x128xf32>
    %c512 = arith.constant 512 : index
    %c0_17 = arith.constant 0 : index
    %23 = vector.load %arg2[%c512, %c0_17] : memref<643x128xf32, #tpu.memory_space<vmem>>, vector<128x128xf32>
    %cst_18 = arith.constant dense<0.000000e+00> : vector<128x128xf32>
    %24 = tpu.matmul %18, %23, %cst_18 {dimension_numbers = #tpu.dot_dimension_numbers<[1], [0], [0], [1], [0, 0, 1, 1], [], []>} : vector<128x128xf32>, vector<128x128xf32>, vector<128x128xf32> -> vector<128x128xf32>
    %25 = arith.addf %22, %24 : vector<128x128xf32>
    %cst_19 = arith.constant dense<0.000000e+00> : vector<128x128xf32>
    %26 = tpu.matmul %0, %25, %cst_19 {dimension_numbers = #tpu.dot_dimension_numbers<[1], [0], [0], [1], [0, 0, 1, 1], [], []>} : vector<128x128xf32>, vector<128x128xf32>, vector<128x128xf32> -> vector<128x128xf32>
    %c642 = arith.constant 642 : index
    %c0_20 = arith.constant 0 : index
    %27 = vector.load %arg2[%c642, %c0_20] : memref<643x128xf32, #tpu.memory_space<vmem>>, vector<1x128xf32>
    %28 = vector.broadcast %27 : vector<1x128xf32> to vector<128x128xf32>
    %29 = arith.addf %26, %28 : vector<128x128xf32>
    %c0_21 = arith.constant 0 : index
    %c0_22 = arith.constant 0 : index
    %30 = vector.load %arg3[%c0_21, %c0_22] : memref<128x128xf32, #tpu.memory_space<vmem>>, vector<128x128xf32>
    tpu.vector_store %arg3[%c0_21, %c0_22], %29 {strides = array<i32>} : memref<128x128xf32, #tpu.memory_space<vmem>>, vector<128x128xf32>,
    return
  }
}

</mosaic_0001>

<llo_original>
// kernel: tpu_custom_call.1
$region0: #{tpu_custom_call.1}
  #allocation0 [shape = 'u32[]', space=smem, size = 0x4, offset = 0x4, fixed_abs, tag = 'smem constant byte address 0x4 - core index']
  #allocation1 [shape = 'u32[144,128]{1,0:T(1,128)}', space=vmem, size = 0x12000, scoped, tag = 'internal scratch']
  %s0 = inlined_call_operand.hbm [shape: f32[128,128], index: 0, kind: input, shape index: {}]
  %s1 = inlined_call_operand.hbm [shape: f32[128,128], index: 1, kind: input, shape index: {}]
  %s2 = inlined_call_operand.hbm [shape: f32[643,128], index: 2, kind: input, shape index: {}]
  %s3 = inlined_call_operand.hbm [shape: f32[128,128], index: 3, kind: output, shape index: {}]
  %s4 = sld [smem:[#allocation0]]
  $region34: #{tpu_custom_call.1} parent=0
    _
  %s6 = ssub.s32 1, %s4
  %s7 = scalar_select 0, %s6, %s4
  $region1: #{tpu_custom_call.1} parent=0
    #allocation2 [shape = 'u8[65536]{0}', space=vmem, size = 0x10000, scoped, tag = 'input window, operand 0, single buffered']
    #allocation3 [shape = 's32[1]{0}', space=sflag, size = 0x4, scoped, tag = 'scoped memory for tpu_custom_call.1']
    #allocation4 [shape = 's32[1]{0}', space=sflag, size = 0x4, scoped, tag = 'scoped memory for tpu_custom_call.1']
    #allocation5 [shape = 'u8[65536]{0}', space=vmem, size = 0x10000, scoped, tag = 'input window, operand 1, single buffered']
    #allocation6 [shape = 's32[1]{0}', space=sflag, size = 0x4, scoped, tag = 'scoped memory for tpu_custom_call.1']
    #allocation7 [shape = 'u8[331776]{0}', space=vmem, size = 0x51000, scoped, tag = 'input window, operand 2, single buffered']
    #allocation8 [shape = 'u8[65536]{0}', space=vmem, size = 0x10000, scoped, tag = 'output window, operand 0, single buffered']
    %8 = vsyncpa [#allocation3], 0
    %9 = vsyncpa [#allocation6], 0
    %10 = vsyncpa [#allocation4], 0
    // Predicated region
    $region2: #{tpu_custom_call.1} parent=1 // pred_check
      _
    $region3: #{tpu_custom_call.1} parent=1 // pred_check_branch
      %12 = sbr.rel (0) target = $region5
    $region4: #{tpu_custom_call.1} parent=1 // pred_region
      %s14 = ssub.s32 2048, 2048
      %15 = vsyncadd [#allocation3], %s14
      %s16 = sshll.u32 [#allocation2], 4
      %s17 = int_to_ptr.vmem [resolvable:$true] %s16
      %22 = dma.hbm_to_vmem [thread:$0]  %s0, 2048, %s17, [#allocation3], 128, 128, 8
    $region5: #{tpu_custom_call.1} parent=1 // pred_fallthru
      _
    // Predicated region
    $region6: #{tpu_custom_call.1} parent=1 // pred_check
      _
    $region7: #{tpu_custom_call.1} parent=1 // pred_check_branch
      %24 = sbr.rel (0) target = $region9
    $region8: #{tpu_custom_call.1} parent=1 // pred_region
      %s26 = ssub.s32 2048, 2048
      %27 = vsyncadd [#allocation6], %s26
      %s28 = sshll.u32 [#allocation5], 4
      %s29 = int_to_ptr.vmem [resolvable:$true] %s28
      %34 = dma.hbm_to_vmem [thread:$0]  %s1, 2048, %s29, [#allocation6], 128, 128, 8
    $region9: #{tpu_custom_call.1} parent=1 // pred_fallthru
      _
    // Predicated region
    $region10: #{tpu_custom_call.1} parent=1 // pred_check
      _
    $region11: #{tpu_custom_call.1} parent=1 // pred_check_branch
      %36 = sbr.rel (0) target = $region13
    $region12: #{tpu_custom_call.1} parent=1 // pred_region
      %s38 = ssub.s32 10368, 10368
      %39 = vsyncadd [#allocation6], %s38
      %s40 = sshll.u32 [#allocation7], 4
      %s41 = int_to_ptr.vmem [resolvable:$true] %s40
      %46 = dma.hbm_to_vmem [thread:$0]  %s2, 10368, %s41, [#allocation6], 128, 128, 8
    $region13: #{tpu_custom_call.1} parent=1 // pred_fallthru
      _
    // Predicated region
    $region14: #{tpu_custom_call.1} parent=1 // pred_check
      _
    $region15: #{tpu_custom_call.1} parent=1 // pred_check_branch
      %48 = sbr.rel (0) target = $region17
    $region16: #{tpu_custom_call.1} parent=1 // pred_region
      %49 = dma.done [#allocation3], 2048
    $region17: #{tpu_custom_call.1} parent=1 // pred_fallthru
      _
    // Predicated region
    $region18: #{tpu_custom_call.1} parent=1 // pred_check
      _
    $region19: #{tpu_custom_call.1} parent=1 // pred_check_branch
      %51 = sbr.rel (0) target = $region21
    $region20: #{tpu_custom_call.1} parent=1 // pred_region
      %52 = dma.done [#allocation6], 2048
    $region21: #{tpu_custom_call.1} parent=1 // pred_fallthru
      _
    // Predicated region
    $region22: #{tpu_custom_call.1} parent=1 // pred_check
      _
    $region23: #{tpu_custom_call.1} parent=1 // pred_check_branch
      %54 = sbr.rel (0) target = $region25
    $region24: #{tpu_custom_call.1} parent=1 // pred_region
      %55 = dma.done [#allocation6], 10368
    $region25: #{tpu_custom_call.1} parent=1 // pred_fallthru
      _
    %v56 = vld [vmem:[#allocation2] sm:$0xff]
    %v57 = vld [vmem:[#allocation2 + $0x8] sm:$0xff]
    %v58 = vld [vmem:[#allocation2 + $0x10] sm:$0xff]
    %v59 = vld [vmem:[#allocation2 + $0x18] sm:$0xff]
    %v60 = vld [vmem:[#allocation2 + $0x20] sm:$0xff]
    %v61 = vld [vmem:[#allocation2 + $0x28] sm:$0xff]
    %v62 = vld [vmem:[#allocation2 + $0x30] sm:$0xff]
    %v63 = vld [vmem:[#allocation2 + $0x38] sm:$0xff]
    %v64 = vld [vmem:[#allocation2 + $0x40] sm:$0xff]
    %v65 = vld [vmem:[#allocation2 + $0x48] sm:$0xff]
    %v66 = vld [vmem:[#allocation2 + $0x50] sm:$0xff]
    %v67 = vld [vmem:[#allocation2 + $0x58] sm:$0xff]
    %v68 = vld [vmem:[#allocation2 + $0x60] sm:$0xff]
    %v69 = vld [vmem:[#allocation2 + $0x68] sm:$0xff]
    %v70 = vld [vmem:[#allocation2 + $0x70] sm:$0xff]
    %v71 = vld [vmem:[#allocation2 + $0x78] sm:$0xff]
    %v72 = vld [vmem:[#allocation5] sm:$0xff]
    %v73 = vld [vmem:[#allocation5 + $0x8] sm:$0xff]
    %v74 = vld [vmem:[#allocation5 + $0x10] sm:$0xff]
    %v75 = vld [vmem:[#allocation5 + $0x18] sm:$0xff]
    %v76 = vld [vmem:[#allocation5 + $0x20] sm:$0xff]
    %v77 = vld [vmem:[#allocation5 + $0x28] sm:$0xff]
    %v78 = vld [vmem:[#allocation5 + $0x30] sm:$0xff]
    %v79 = vld [vmem:[#allocation5 + $0x38] sm:$0xff]
    %v80 = vld [vmem:[#allocation5 + $0x40] sm:$0xff]
    %v81 = vld [vmem:[#allocation5 + $0x48] sm:$0xff]
    %v82 = vld [vmem:[#allocation5 + $0x50] sm:$0xff]
    %v83 = vld [vmem:[#allocation5 + $0x58] sm:$0xff]
    %v84 = vld [vmem:[#allocation5 + $0x60] sm:$0xff]
    %v85 = vld [vmem:[#allocation5 + $0x68] sm:$0xff]
    %v86 = vld [vmem:[#allocation5 + $0x70] sm:$0xff]
    %v87 = vld [vmem:[#allocation5 + $0x78] sm:$0xff]
    %v88 = vld [vmem:[#allocation7] sm:$0xff]
    %v89 = vld [vmem:[#allocation7 + $0x8] sm:$0xff]
    %v90 = vld [vmem:[#allocation7 + $0x10] sm:$0xff]
    %v91 = vld [vmem:[#allocation7 + $0x18] sm:$0xff]
    %v92 = vld [vmem:[#allocation7 + $0x20] sm:$0xff]
    %v93 = vld [vmem:[#allocation7 + $0x28] sm:$0xff]
    %v94 = vld [vmem:[#allocation7 + $0x30] sm:$0xff]
    %v95 = vld [vmem:[#allocation7 + $0x38] sm:$0xff]
    %v96 = vld [vmem:[#allocation7 + $0x40] sm:$0xff]
    %v97 = vld [vmem:[#allocation7 + $0x48] sm:$0xff]
    %v98 = vld [vmem:[#allocation7 + $0x50] sm:$0xff]
    %v99 = vld [vmem:[#allocation7 + $0x58] sm:$0xff]
    %v100 = vld [vmem:[#allocation7 + $0x60] sm:$0xff]
    %v101 = vld [vmem:[#allocation7 + $0x68] sm:$0xff]
    %v102 = vld [vmem:[#allocation7 + $0x70] sm:$0xff]
    %v103 = vld [vmem:[#allocation7 + $0x78] sm:$0xff]
    %104 = vmatprep.subr.mxu0 0.0
    %105 = vmatpush1.msra.mxu0 %v103
    %106 = vmatprep.subr.mxu0 0.0
    %107 = vmatpush1.msra.mxu0 %v102
    %108 = vmatprep.subr.mxu0 0.0
    %109 = vmatpush1.msra.mxu0 %v101
    %110 = vmatprep.subr.mxu0 0.0
    %111 = vmatpush1.msra.mxu0 %v100
    %112 = vmatprep.subr.mxu0 0.0
    %113 = vmatpush1.msra.mxu0 %v99
    %114 = vmatprep.subr.mxu0 0.0
    %115 = vmatpush1.msra.mxu0 %v98
    %116 = vmatprep.subr.mxu0 0.0
    %117 = vmatpush1.msra.mxu0 %v97
    %118 = vmatprep.subr.mxu0 0.0
    %119 = vmatpush1.msra.mxu0 %v96
    %120 = vmatprep.subr.mxu0 0.0
    %121 = vmatpush1.msra.mxu0 %v95
    %122 = vmatprep.subr.mxu0 0.0
    %123 = vmatpush1.msra.mxu0 %v94
    %124 = vmatprep.subr.mxu0 0.0
    %125 = vmatpush1.msra.mxu0 %v93
    %126 = vmatprep.subr.mxu0 0.0
    %127 = vmatpush1.msra.mxu0 %v92
    %128 = vmatprep.subr.mxu0 0.0
    %129 = vmatpush1.msra.mxu0 %v91
    %130 = vmatprep.subr.mxu0 0.0
    %131 = vmatpush1.msra.mxu0 %v90
    %132 = vmatprep.subr.mxu0 0.0
    %133 = vmatpush1.msra.mxu0 %v89
    %134 = vmatprep.subr.mxu0 0.0
    %135 = vmatpush1.msra.mxu0 %v88
    %136 = vmatprep.subr.mxu0 0.0
    %137 = vmatpush2.msra.mxu0 0.0
    %138 = vmatprep.subr.mxu0 0.0
    %139 = vmatpush2.msra.mxu0 0.0
    %140 = vmatprep.subr.mxu0 0.0
    %141 = vmatpush2.msra.mxu0 0.0
    %142 = vmatprep.subr.mxu0 0.0
    %143 = vmatpush2.msra.mxu0 0.0
    %144 = vmatprep.subr.mxu0 0.0
    %145 = vmatpush2.msra.mxu0 0.0
    %146 = vmatprep.subr.mxu0 0.0
    %147 = vmatpush2.msra.mxu0 0.0
    %148 = vmatprep.subr.mxu0 0.0
    %149 = vmatpush2.msra.mxu0 0.0
    %150 = vmatprep.subr.mxu0 0.0
    %151 = vmatpush2.msra.mxu0 0.0
    %152 = vmatprep.subr.mxu0 0.0
    %153 = vmatpush2.msra.mxu0 0.0
    %154 = vmatprep.subr.mxu0 0.0
    %155 = vmatpush2.msra.mxu0 0.0
    %156 = vmatprep.subr.mxu0 0.0
    %157 = vmatpush2.msra.mxu0 0.0
    %158 = vmatprep.subr.mxu0 0.0
    %159 = vmatpush2.msra.mxu0 0.0
    %160 = vmatprep.subr.mxu0 0.0
    %161 = vmatpush2.msra.mxu0 0.0
    %162 = vmatprep.subr.mxu0 0.0
    %163 = vmatpush2.msra.mxu0 0.0
    %164 = vmatprep.subr.mxu0 0.0
    %165 = vmatpush2.msra.mxu0 0.0
    %166 = vmatprep.subr.mxu0 0.0
    %167 = vmatpush2.msra.mxu0 0.0
    %168 = vmatprep.mubr.f32.mxu0 0.0
    %169 = vmatmul.mubr.f32.gmra.mxu0 %v72
    %v170 = vpop.f32.mrf.mxu0
    %v171 = vadd.f32 0.0, %v170
    %v172 = vpop.f32.mrf.mxu0
    %173 = vmatprep.mubr.f32.mxu0 0.0
    %174 = vmatmul.mubr.f32.gmra.mxu0 %v73
    %v175 = vpop.f32.mrf.mxu0
    %v176 = vadd.f32 0.0, %v175
    %v177 = vpop.f32.mrf.mxu0
    %178 = vmatprep.mubr.f32.mxu0 0.0
    %179 = vmatmul.mubr.f32.gmra.mxu0 %v74
    %v180 = vpop.f32.mrf.mxu0
    %v181 = vadd.f32 0.0, %v180
    %v182 = vpop.f32.mrf.mxu0
    %183 = vmatprep.mubr.f32.mxu0 0.0
    %184 = vmatmul.mubr.f32.gmra.mxu0 %v75
    %v185 = vpop.f32.mrf.mxu0
    %v186 = vadd.f32 0.0, %v185
    %v187 = vpop.f32.mrf.mxu0
    %188 = vmatprep.mubr.f32.mxu0 0.0
    %189 = vmatmul.mubr.f32.gmra.mxu0 %v76
    %v190 = vpop.f32.mrf.mxu0
    %v191 = vadd.f32 0.0, %v190
    %v192 = vpop.f32.mrf.mxu0
    %193 = vmatprep.mubr.f32.mxu0 0.0
    %194 = vmatmul.mubr.f32.gmra.mxu0 %v77
    %v195 = vpop.f32.mrf.mxu0
    %v196 = vadd.f32 0.0, %v195
    %v197 = vpop.f32.mrf.mxu0
    %198 = vmatprep.mubr.f32.mxu0 0.0
    %199 = vmatmul.mubr.f32.gmra.mxu0 %v78
    %v200 = vpop.f32.mrf.mxu0
    %v201 = vadd.f32 0.0, %v200
    %v202 = vpop.f32.mrf.mxu0
    %203 = vmatprep.mubr.f32.mxu0 0.0
    %204 = vmatmul.mubr.f32.gmra.mxu0 %v79
    %v205 = vpop.f32.mrf.mxu0
    %v206 = vadd.f32 0.0, %v205
    %v207 = vpop.f32.mrf.mxu0
    %208 = vmatprep.mubr.f32.mxu0 0.0
    %209 = vmatmul.mubr.f32.gmra.mxu0 %v80
    %v210 = vpop.f32.mrf.mxu0
    %v211 = vadd.f32 0.0, %v210
    %v212 = vpop.f32.mrf.mxu0
    %213 = vmatprep.mubr.f32.mxu0 0.0
    %214 = vmatmul.mubr.f32.gmra.mxu0 %v81
    %v215 = vpop.f32.mrf.mxu0
    %v216 = vadd.f32 0.0, %v215
    %v217 = vpop.f32.mrf.mxu0
    %218 = vmatprep.mubr.f32.mxu0 0.0
    %219 = vmatmul.mubr.f32.gmra.mxu0 %v82
    %v220 = vpop.f32.mrf.mxu0
    %v221 = vadd.f32 0.0, %v220
    %v222 = vpop.f32.mrf.mxu0
    %223 = vmatprep.mubr.f32.mxu0 0.0
    %224 = vmatmul.mubr.f32.gmra.mxu0 %v83
    %v225 = vpop.f32.mrf.mxu0
    %v226 = vadd.f32 0.0, %v225
    %v227 = vpop.f32.mrf.mxu0
    %228 = vmatprep.mubr.f32.mxu0 0.0
    %229 = vmatmul.mubr.f32.gmra.mxu0 %v84
    %v230 = vpop.f32.mrf.mxu0
    %v231 = vadd.f32 0.0, %v230
    %v232 = vpop.f32.mrf.mxu0
    %233 = vmatprep.mubr.f32.mxu0 0.0
    %234 = vmatmul.mubr.f32.gmra.mxu0 %v85
    %v235 = vpop.f32.mrf.mxu0
    %v236 = vadd.f32 0.0, %v235
    %v237 = vpop.f32.mrf.mxu0
    %238 = vmatprep.mubr.f32.mxu0 0.0
    %239 = vmatmul.mubr.f32.gmra.mxu0 %v86
    %v240 = vpop.f32.mrf.mxu0
    %v241 = vadd.f32 0.0, %v240
    %v242 = vpop.f32.mrf.mxu0
    %243 = vmatprep.mubr.f32.mxu0 0.0
    %244 = vmatmul.mubr.f32.gmra.mxu0 %v87
    %v245 = vpop.f32.mrf.mxu0
    %v246 = vadd.f32 0.0, %v245
    %v247 = vpop.f32.mrf.mxu0
    %248 = vdwg.mxu0
    %v249 = vld [vmem:[#allocation7 + $0x280] sm:$0x1]
    %v250 = vlaneseq
    %v251 = vshrl.u32 %v250, 7
    %v252 = vsub.s32 0, %v251
    %v253 = vrot.slane %v249, %v252
    %254 = vmatprep.subr.mxu0 0.0
    %255 = vmatpush1.msra.mxu0 %v246
    %256 = vmatprep.subr.mxu0 0.0
    %257 = vmatpush1.msra.mxu0 %v241
    %258 = vmatprep.subr.mxu0 0.0
    %259 = vmatpush1.msra.mxu0 %v236
    %260 = vmatprep.subr.mxu0 0.0
    %261 = vmatpush1.msra.mxu0 %v231
    %262 = vmatprep.subr.mxu0 0.0
    %263 = vmatpush1.msra.mxu0 %v226
    %264 = vmatprep.subr.mxu0 0.0
    %265 = vmatpush1.msra.mxu0 %v221
    %266 = vmatprep.subr.mxu0 0.0
    %267 = vmatpush1.msra.mxu0 %v216
    %268 = vmatprep.subr.mxu0 0.0
    %269 = vmatpush1.msra.mxu0 %v211
    %270 = vmatprep.subr.mxu0 0.0
    %271 = vmatpush1.msra.mxu0 %v206
    %272 = vmatprep.subr.mxu0 0.0
    %273 = vmatpush1.msra.mxu0 %v201
    %274 = vmatprep.subr.mxu0 0.0
    %275 = vmatpush1.msra.mxu0 %v196
    %276 = vmatprep.subr.mxu0 0.0
    %277 = vmatpush1.msra.mxu0 %v191
    %278 = vmatprep.subr.mxu0 0.0
    %279 = vmatpush1.msra.mxu0 %v186
    %280 = vmatprep.subr.mxu0 0.0
    %281 = vmatpush1.msra.mxu0 %v181
    %282 = vmatprep.subr.mxu0 0.0
    %283 = vmatpush1.msra.mxu0 %v176
    %284 = vmatprep.subr.mxu0 0.0
    %285 = vmatpush1.msra.mxu0 %v171
    %286 = vmatprep.subr.mxu0 0.0
    %287 = vmatpush2.msra.mxu0 0.0
    %288 = vmatprep.subr.mxu0 0.0
    %289 = vmatpush2.msra.mxu0 0.0
    %290 = vmatprep.subr.mxu0 0.0
    %291 = vmatpush2.msra.mxu0 0.0
    %292 = vmatprep.subr.mxu0 0.0
    %293 = vmatpush2.msra.mxu0 0.0
    %294 = vmatprep.subr.mxu0 0.0
    %295 = vmatpush2.msra.mxu0 0.0
    %296 = vmatprep.subr.mxu0 0.0
    %297 = vmatpush2.msra.mxu0 0.0
    %298 = vmatprep.subr.mxu0 0.0
    %299 = vmatpush2.msra.mxu0 0.0
    %300 = vmatprep.subr.mxu0 0.0
    %301 = vmatpush2.msra.mxu0 0.0
    %302 = vmatprep.subr.mxu0 0.0
    %303 = vmatpush2.msra.mxu0 0.0
    %304 = vmatprep.subr.mxu0 0.0
    %305 = vmatpush2.msra.mxu0 0.0
    %306 = vmatprep.subr.mxu0 0.0
    %307 = vmatpush2.msra.mxu0 0.0
    %308 = vmatprep.subr.mxu0 0.0
    %309 = vmatpush2.msra.mxu0 0.0
    %310 = vmatprep.subr.mxu0 0.0
    %311 = vmatpush2.msra.mxu0 0.0
    %312 = vmatprep.subr.mxu0 0.0
    %313 = vmatpush2.msra.mxu0 0.0
    %314 = vmatprep.subr.mxu0 0.0
    %315 = vmatpush2.msra.mxu0 0.0
    %316 = vmatprep.subr.mxu0 0.0
    %317 = vmatpush2.msra.mxu0 0.0
    %318 = vmatprep.mubr.f32.mxu0 0.0
    %319 = vmatmul.mubr.f32.gmra.mxu0 %v56
    %v320 = vpop.f32.mrf.mxu0
    %v321 = vadd.f32 %v253, %v320
    %v322 = vpop.f32.mrf.mxu0
    %323 = vmatprep.mubr.f32.mxu0 0.0
    %324 = vmatmul.mubr.f32.gmra.mxu0 %v57
    %v325 = vpop.f32.mrf.mxu0
    %v326 = vadd.f32 %v253, %v325
    %v327 = vpop.f32.mrf.mxu0
    %328 = vmatprep.mubr.f32.mxu0 0.0
    %329 = vmatmul.mubr.f32.gmra.mxu0 %v58
    %v330 = vpop.f32.mrf.mxu0
    %v331 = vadd.f32 %v253, %v330
    %v332 = vpop.f32.mrf.mxu0
    %333 = vmatprep.mubr.f32.mxu0 0.0
    %334 = vmatmul.mubr.f32.gmra.mxu0 %v59
    %v335 = vpop.f32.mrf.mxu0
    %v336 = vadd.f32 %v253, %v335
    %v337 = vpop.f32.mrf.mxu0
    %338 = vmatprep.mubr.f32.mxu0 0.0
    %339 = vmatmul.mubr.f32.gmra.mxu0 %v60
    %v340 = vpop.f32.mrf.mxu0
    %v341 = vadd.f32 %v253, %v340
    %v342 = vpop.f32.mrf.mxu0
    %343 = vmatprep.mubr.f32.mxu0 0.0
    %344 = vmatmul.mubr.f32.gmra.mxu0 %v61
    %v345 = vpop.f32.mrf.mxu0
    %v346 = vadd.f32 %v253, %v345
    %v347 = vpop.f32.mrf.mxu0
    %348 = vmatprep.mubr.f32.mxu0 0.0
    %349 = vmatmul.mubr.f32.gmra.mxu0 %v62
    %v350 = vpop.f32.mrf.mxu0
    %v351 = vadd.f32 %v253, %v350
    %v352 = vpop.f32.mrf.mxu0
    %353 = vmatprep.mubr.f32.mxu0 0.0
    %354 = vmatmul.mubr.f32.gmra.mxu0 %v63
    %v355 = vpop.f32.mrf.mxu0
    %v356 = vadd.f32 %v253, %v355
    %v357 = vpop.f32.mrf.mxu0
    %358 = vmatprep.mubr.f32.mxu0 0.0
    %359 = vmatmul.mubr.f32.gmra.mxu0 %v64
    %v360 = vpop.f32.mrf.mxu0
    %v361 = vadd.f32 %v253, %v360
    %v362 = vpop.f32.mrf.mxu0
    %363 = vmatprep.mubr.f32.mxu0 0.0
    %364 = vmatmul.mubr.f32.gmra.mxu0 %v65
    %v365 = vpop.f32.mrf.mxu0
    %v366 = vadd.f32 %v253, %v365
    %v367 = vpop.f32.mrf.mxu0
    %368 = vmatprep.mubr.f32.mxu0 0.0
    %369 = vmatmul.mubr.f32.gmra.mxu0 %v66
    %v370 = vpop.f32.mrf.mxu0
    %v371 = vadd.f32 %v253, %v370
    %v372 = vpop.f32.mrf.mxu0
    %373 = vmatprep.mubr.f32.mxu0 0.0
    %374 = vmatmul.mubr.f32.gmra.mxu0 %v67
    %v375 = vpop.f32.mrf.mxu0
    %v376 = vadd.f32 %v253, %v375
    %v377 = vpop.f32.mrf.mxu0
    %378 = vmatprep.mubr.f32.mxu0 0.0
    %379 = vmatmul.mubr.f32.gmra.mxu0 %v68
    %v380 = vpop.f32.mrf.mxu0
    %v381 = vadd.f32 %v253, %v380
    %v382 = vpop.f32.mrf.mxu0
    %383 = vmatprep.mubr.f32.mxu0 0.0
    %384 = vmatmul.mubr.f32.gmra.mxu0 %v69
    %v385 = vpop.f32.mrf.mxu0
    %v386 = vadd.f32 %v253, %v385
    %v387 = vpop.f32.mrf.mxu0
    %388 = vmatprep.mubr.f32.mxu0 0.0
    %389 = vmatmul.mubr.f32.gmra.mxu0 %v70
    %v390 = vpop.f32.mrf.mxu0
    %v391 = vadd.f32 %v253, %v390
    %v392 = vpop.f32.mrf.mxu0
    %393 = vmatprep.mubr.f32.mxu0 0.0
    %394 = vmatmul.mubr.f32.gmra.mxu0 %v71
    %v395 = vpop.f32.mrf.mxu0
    %v396 = vadd.f32 %v253, %v395
    %v397 = vpop.f32.mrf.mxu0
    %398 = vdwg.mxu0
    %v399 = vmax.f32 %v321, 0.0
    %v400 = vmax.f32 %v326, 0.0
    %v401 = vmax.f32 %v331, 0.0
    %v402 = vmax.f32 %v336, 0.0
    %v403 = vmax.f32 %v341, 0.0
    %v404 = vmax.f32 %v346, 0.0
    %v405 = vmax.f32 %v351, 0.0
    %v406 = vmax.f32 %v356, 0.0
    %v407 = vmax.f32 %v361, 0.0
    %v408 = vmax.f32 %v366, 0.0
    %v409 = vmax.f32 %v371, 0.0
    %v410 = vmax.f32 %v376, 0.0
    %v411 = vmax.f32 %v381, 0.0
    %v412 = vmax.f32 %v386, 0.0
    %v413 = vmax.f32 %v391, 0.0
    %v414 = vmax.f32 %v396, 0.0
    %v415 = vld [vmem:[#allocation7 + $0x80] sm:$0xff]
    %v416 = vld [vmem:[#allocation7 + $0x88] sm:$0xff]
    %v417 = vld [vmem:[#allocation7 + $0x90] sm:$0xff]
    %v418 = vld [vmem:[#allocation7 + $0x98] sm:$0xff]
    %v419 = vld [vmem:[#allocation7 + $0xa0] sm:$0xff]
    %v420 = vld [vmem:[#allocation7 + $0xa8] sm:$0xff]
    %v421 = vld [vmem:[#allocation7 + $0xb0] sm:$0xff]
    %v422 = vld [vmem:[#allocation7 + $0xb8] sm:$0xff]
    %v423 = vld [vmem:[#allocation7 + $0xc0] sm:$0xff]
    %v424 = vld [vmem:[#allocation7 + $0xc8] sm:$0xff]
    %v425 = vld [vmem:[#allocation7 + $0xd0] sm:$0xff]
    %v426 = vld [vmem:[#allocation7 + $0xd8] sm:$0xff]
    %v427 = vld [vmem:[#allocation7 + $0xe0] sm:$0xff]
    %v428 = vld [vmem:[#allocation7 + $0xe8] sm:$0xff]
    %v429 = vld [vmem:[#allocation7 + $0xf0] sm:$0xff]
    %v430 = vld [vmem:[#allocation7 + $0xf8] sm:$0xff]
    %v431 = vld [vmem:[#allocation7 + $0x100] sm:$0xff]
    %v432 = vld [vmem:[#allocation7 + $0x108] sm:$0xff]
    %v433 = vld [vmem:[#allocation7 + $0x110] sm:$0xff]
    %v434 = vld [vmem:[#allocation7 + $0x118] sm:$0xff]
    %v435 = vld [vmem:[#allocation7 + $0x120] sm:$0xff]
    %v436 = vld [vmem:[#allocation7 + $0x128] sm:$0xff]
    %v437 = vld [vmem:[#allocation7 + $0x130] sm:$0xff]
    %v438 = vld [vmem:[#allocation7 + $0x138] sm:$0xff]
    %v439 = vld [vmem:[#allocation7 + $0x140] sm:$0xff]
    %v440 = vld [vmem:[#allocation7 + $0x148] sm:$0xff]
    %v441 = vld [vmem:[#allocation7 + $0x150] sm:$0xff]
    %v442 = vld [vmem:[#allocation7 + $0x158] sm:$0xff]
    %v443 = vld [vmem:[#allocation7 + $0x160] sm:$0xff]
    %v444 = vld [vmem:[#allocation7 + $0x168] sm:$0xff]
    %v445 = vld [vmem:[#allocation7 + $0x170] sm:$0xff]
    %v446 = vld [vmem:[#allocation7 + $0x178] sm:$0xff]
    %447 = vmatprep.subr.mxu0 0.0
    %448 = vmatpush1.msra.mxu0 %v446
    %449 = vmatprep.subr.mxu0 0.0
    %450 = vmatpush1.msra.mxu0 %v445
    %451 = vmatprep.subr.mxu0 0.0
    %452 = vmatpush1.msra.mxu0 %v444
    %453 = vmatprep.subr.mxu0 0.0
    %454 = vmatpush1.msra.mxu0 %v443
    %455 = vmatprep.subr.mxu0 0.0
    %456 = vmatpush1.msra.mxu0 %v442
    %457 = vmatprep.subr.mxu0 0.0
    %458 = vmatpush1.msra.mxu0 %v441
    %459 = vmatprep.subr.mxu0 0.0
    %460 = vmatpush1.msra.mxu0 %v440
    %461 = vmatprep.subr.mxu0 0.0
    %462 = vmatpush1.msra.mxu0 %v439
    %463 = vmatprep.subr.mxu0 0.0
    %464 = vmatpush1.msra.mxu0 %v438
    %465 = vmatprep.subr.mxu0 0.0
    %466 = vmatpush1.msra.mxu0 %v437
    %467 = vmatprep.subr.mxu0 0.0
    %468 = vmatpush1.msra.mxu0 %v436
    %469 = vmatprep.subr.mxu0 0.0
    %470 = vmatpush1.msra.mxu0 %v435
    %471 = vmatprep.subr.mxu0 0.0
    %472 = vmatpush1.msra.mxu0 %v434
    %473 = vmatprep.subr.mxu0 0.0
    %474 = vmatpush1.msra.mxu0 %v433
    %475 = vmatprep.subr.mxu0 0.0
    %476 = vmatpush1.msra.mxu0 %v432
    %477 = vmatprep.subr.mxu0 0.0
    %478 = vmatpush1.msra.mxu0 %v431
    %479 = vmatprep.subr.mxu0 0.0
    %480 = vmatpush2.msra.mxu0 0.0
    %481 = vmatprep.subr.mxu0 0.0
    %482 = vmatpush2.msra.mxu0 0.0
    %483 = vmatprep.subr.mxu0 0.0
    %484 = vmatpush2.msra.mxu0 0.0
    %485 = vmatprep.subr.mxu0 0.0
    %486 = vmatpush2.msra.mxu0 0.0
    %487 = vmatprep.subr.mxu0 0.0
    %488 = vmatpush2.msra.mxu0 0.0
    %489 = vmatprep.subr.mxu0 0.0
    %490 = vmatpush2.msra.mxu0 0.0
    %491 = vmatprep.subr.mxu0 0.0
    %492 = vmatpush2.msra.mxu0 0.0
    %493 = vmatprep.subr.mxu0 0.0
    %494 = vmatpush2.msra.mxu0 0.0
    %495 = vmatprep.subr.mxu0 0.0
    %496 = vmatpush2.msra.mxu0 0.0
    %497 = vmatprep.subr.mxu0 0.0
    %498 = vmatpush2.msra.mxu0 0.0
    %499 = vmatprep.subr.mxu0 0.0
    %500 = vmatpush2.msra.mxu0 0.0
    %501 = vmatprep.subr.mxu0 0.0
    %502 = vmatpush2.msra.mxu0 0.0
    %503 = vmatprep.subr.mxu0 0.0
    %504 = vmatpush2.msra.mxu0 0.0
    %505 = vmatprep.subr.mxu0 0.0
    %506 = vmatpush2.msra.mxu0 0.0
    %507 = vmatprep.subr.mxu0 0.0
    %508 = vmatpush2.msra.mxu0 0.0
    %509 = vmatprep.subr.mxu0 0.0
    %510 = vmatpush2.msra.mxu0 0.0
    %511 = vmatprep.mubr.f32.mxu0 0.0
    %512 = vmatmul.mubr.f32.gmra.mxu0 %v321
    %v513 = vpop.f32.mrf.mxu0
    %v514 = vadd.f32 0.0, %v513
    %v515 = vpop.f32.mrf.mxu0
    %516 = vmatprep.mubr.f32.mxu0 0.0
    %517 = vmatmul.mubr.f32.gmra.mxu0 %v326
    %v518 = vpop.f32.mrf.mxu0
    %v519 = vadd.f32 0.0, %v518
    %v520 = vpop.f32.mrf.mxu0
    %521 = vmatprep.mubr.f32.mxu0 0.0
    %522 = vmatmul.mubr.f32.gmra.mxu0 %v331
    %v523 = vpop.f32.mrf.mxu0
    %v524 = vadd.f32 0.0, %v523
    %v525 = vpop.f32.mrf.mxu0
    %526 = vmatprep.mubr.f32.mxu0 0.0
    %527 = vmatmul.mubr.f32.gmra.mxu0 %v336
    %v528 = vpop.f32.mrf.mxu0
    %v529 = vadd.f32 0.0, %v528
    %v530 = vpop.f32.mrf.mxu0
    %531 = vmatprep.mubr.f32.mxu0 0.0
    %532 = vmatmul.mubr.f32.gmra.mxu0 %v341
    %v533 = vpop.f32.mrf.mxu0
    %v534 = vadd.f32 0.0, %v533
    %v535 = vpop.f32.mrf.mxu0
    %536 = vmatprep.mubr.f32.mxu0 0.0
    %537 = vmatmul.mubr.f32.gmra.mxu0 %v346
    %v538 = vpop.f32.mrf.mxu0
    %v539 = vadd.f32 0.0, %v538
    %v540 = vpop.f32.mrf.mxu0
    %541 = vmatprep.mubr.f32.mxu0 0.0
    %542 = vmatmul.mubr.f32.gmra.mxu0 %v351
    %v543 = vpop.f32.mrf.mxu0
    %v544 = vadd.f32 0.0, %v543
    %v545 = vpop.f32.mrf.mxu0
    %546 = vmatprep.mubr.f32.mxu0 0.0
    %547 = vmatmul.mubr.f32.gmra.mxu0 %v356
    %v548 = vpop.f32.mrf.mxu0
    %v549 = vadd.f32 0.0, %v548
    %v550 = vpop.f32.mrf.mxu0
    %551 = vmatprep.mubr.f32.mxu0 0.0
    %552 = vmatmul.mubr.f32.gmra.mxu0 %v361
    %v553 = vpop.f32.mrf.mxu0
    %v554 = vadd.f32 0.0, %v553
    %v555 = vpop.f32.mrf.mxu0
    %556 = vmatprep.mubr.f32.mxu0 0.0
    %557 = vmatmul.mubr.f32.gmra.mxu0 %v366
    %v558 = vpop.f32.mrf.mxu0
    %v559 = vadd.f32 0.0, %v558
    %v560 = vpop.f32.mrf.mxu0
    %561 = vmatprep.mubr.f32.mxu0 0.0
    %562 = vmatmul.mubr.f32.gmra.mxu0 %v371
    %v563 = vpop.f32.mrf.mxu0
    %v564 = vadd.f32 0.0, %v563
    %v565 = vpop.f32.mrf.mxu0
    %566 = vmatprep.mubr.f32.mxu0 0.0
    %567 = vmatmul.mubr.f32.gmra.mxu0 %v376
    %v568 = vpop.f32.mrf.mxu0
    %v569 = vadd.f32 0.0, %v568
    %v570 = vpop.f32.mrf.mxu0
    %571 = vmatprep.mubr.f32.mxu0 0.0
    %572 = vmatmul.mubr.f32.gmra.mxu0 %v381
    %v573 = vpop.f32.mrf.mxu0
    %v574 = vadd.f32 0.0, %v573
    %v575 = vpop.f32.mrf.mxu0
    %576 = vmatprep.mubr.f32.mxu0 0.0
    %577 = vmatmul.mubr.f32.gmra.mxu0 %v386
    %v578 = vpop.f32.mrf.mxu0
    %v579 = vadd.f32 0.0, %v578
    %v580 = vpop.f32.mrf.mxu0
    %581 = vmatprep.mubr.f32.mxu0 0.0
    %582 = vmatmul.mubr.f32.gmra.mxu0 %v391
    %v583 = vpop.f32.mrf.mxu0
    %v584 = vadd.f32 0.0, %v583
    %v585 = vpop.f32.mrf.mxu0
    %586 = vmatprep.mubr.f32.mxu0 0.0
    %587 = vmatmul.mubr.f32.gmra.mxu0 %v396
    %v588 = vpop.f32.mrf.mxu0
    %v589 = vadd.f32 0.0, %v588
    %v590 = vpop.f32.mrf.mxu0
    %591 = vdwg.mxu0
    %592 = vmatprep.subr.mxu0 0.0
    %593 = vmatpush1.msra.mxu0 %v430
    %594 = vmatprep.subr.mxu0 0.0
    %595 = vmatpush1.msra.mxu0 %v429
    %596 = vmatprep.subr.mxu0 0.0
    %597 = vmatpush1.msra.mxu0 %v428
    %598 = vmatprep.subr.mxu0 0.0
    %599 = vmatpush1.msra.mxu0 %v427
    %600 = vmatprep.subr.mxu0 0.0
    %601 = vmatpush1.msra.mxu0 %v426
    %602 = vmatprep.subr.mxu0 0.0
    %603 = vmatpush1.msra.mxu0 %v425
    %604 = vmatprep.subr.mxu0 0.0
    %605 = vmatpush1.msra.mxu0 %v424
    %606 = vmatprep.subr.mxu0 0.0
    %607 = vmatpush1.msra.mxu0 %v423
    %608 = vmatprep.subr.mxu0 0.0
    %609 = vmatpush1.msra.mxu0 %v422
    %610 = vmatprep.subr.mxu0 0.0
    %611 = vmatpush1.msra.mxu0 %v421
    %612 = vmatprep.subr.mxu0 0.0
    %613 = vmatpush1.msra.mxu0 %v420
    %614 = vmatprep.subr.mxu0 0.0
    %615 = vmatpush1.msra.mxu0 %v419
    %616 = vmatprep.subr.mxu0 0.0
    %617 = vmatpush1.msra.mxu0 %v418
    %618 = vmatprep.subr.mxu0 0.0
    %619 = vmatpush1.msra.mxu0 %v417
    %620 = vmatprep.subr.mxu0 0.0
    %621 = vmatpush1.msra.mxu0 %v416
    %622 = vmatprep.subr.mxu0 0.0
    %623 = vmatpush1.msra.mxu0 %v415
    %624 = vmatprep.subr.mxu0 0.0
    %625 = vmatpush2.msra.mxu0 0.0
    %626 = vmatprep.subr.mxu0 0.0
    %627 = vmatpush2.msra.mxu0 0.0
    %628 = vmatprep.subr.mxu0 0.0
    %629 = vmatpush2.msra.mxu0 0.0
    %630 = vmatprep.subr.mxu0 0.0
    %631 = vmatpush2.msra.mxu0 0.0
    %632 = vmatprep.subr.mxu0 0.0
    %633 = vmatpush2.msra.mxu0 0.0
    %634 = vmatprep.subr.mxu0 0.0
    %635 = vmatpush2.msra.mxu0 0.0
    %636 = vmatprep.subr.mxu0 0.0
    %637 = vmatpush2.msra.mxu0 0.0
    %638 = vmatprep.subr.mxu0 0.0
    %639 = vmatpush2.msra.mxu0 0.0
    %640 = vmatprep.subr.mxu0 0.0
    %641 = vmatpush2.msra.mxu0 0.0
    %642 = vmatprep.subr.mxu0 0.0
    %643 = vmatpush2.msra.mxu0 0.0
    %644 = vmatprep.subr.mxu0 0.0
    %645 = vmatpush2.msra.mxu0 0.0
    %646 = vmatprep.subr.mxu0 0.0
    %647 = vmatpush2.msra.mxu0 0.0
    %648 = vmatprep.subr.mxu0 0.0
    %649 = vmatpush2.msra.mxu0 0.0
    %650 = vmatprep.subr.mxu0 0.0
    %651 = vmatpush2.msra.mxu0 0.0
    %652 = vmatprep.subr.mxu0 0.0
    %653 = vmatpush2.msra.mxu0 0.0
    %654 = vmatprep.subr.mxu0 0.0
    %655 = vmatpush2.msra.mxu0 0.0
    %656 = vmatprep.mubr.f32.mxu0 0.0
    %657 = vmatmul.mubr.f32.gmra.mxu0 %v399
    %v658 = vpop.f32.mrf.mxu0
    %v659 = vadd.f32 %v514, %v658
    %v660 = vpop.f32.mrf.mxu0
    %661 = vmatprep.mubr.f32.mxu0 0.0
    %662 = vmatmul.mubr.f32.gmra.mxu0 %v400
    %v663 = vpop.f32.mrf.mxu0
    %v664 = vadd.f32 %v519, %v663
    %v665 = vpop.f32.mrf.mxu0
    %666 = vmatprep.mubr.f32.mxu0 0.0
    %667 = vmatmul.mubr.f32.gmra.mxu0 %v401
    %v668 = vpop.f32.mrf.mxu0
    %v669 = vadd.f32 %v524, %v668
    %v670 = vpop.f32.mrf.mxu0
    %671 = vmatprep.mubr.f32.mxu0 0.0
    %672 = vmatmul.mubr.f32.gmra.mxu0 %v402
    %v673 = vpop.f32.mrf.mxu0
    %v674 = vadd.f32 %v529, %v673
    %v675 = vpop.f32.mrf.mxu0
    %676 = vmatprep.mubr.f32.mxu0 0.0
    %677 = vmatmul.mubr.f32.gmra.mxu0 %v403
    %v678 = vpop.f32.mrf.mxu0
    %v679 = vadd.f32 %v534, %v678
    %v680 = vpop.f32.mrf.mxu0
    %681 = vmatprep.mubr.f32.mxu0 0.0
    %682 = vmatmul.mubr.f32.gmra.mxu0 %v404
    %v683 = vpop.f32.mrf.mxu0
    %v684 = vadd.f32 %v539, %v683
    %v685 = vpop.f32.mrf.mxu0
    %686 = vmatprep.mubr.f32.mxu0 0.0
    %687 = vmatmul.mubr.f32.gmra.mxu0 %v405
    %v688 = vpop.f32.mrf.mxu0
    %v689 = vadd.f32 %v544, %v688
    %v690 = vpop.f32.mrf.mxu0
    %691 = vmatprep.mubr.f32.mxu0 0.0
    %692 = vmatmul.mubr.f32.gmra.mxu0 %v406
    %v693 = vpop.f32.mrf.mxu0
    %v694 = vadd.f32 %v549, %v693
    %v695 = vpop.f32.mrf.mxu0
    %696 = vmatprep.mubr.f32.mxu0 0.0
    %697 = vmatmul.mubr.f32.gmra.mxu0 %v407
    %v698 = vpop.f32.mrf.mxu0
    %v699 = vadd.f32 %v554, %v698
    %v700 = vpop.f32.mrf.mxu0
    %701 = vmatprep.mubr.f32.mxu0 0.0
    %702 = vmatmul.mubr.f32.gmra.mxu0 %v408
    %v703 = vpop.f32.mrf.mxu0
    %v704 = vadd.f32 %v559, %v703
    %v705 = vpop.f32.mrf.mxu0
    %706 = vmatprep.mubr.f32.mxu0 0.0
    %707 = vmatmul.mubr.f32.gmra.mxu0 %v409
    %v708 = vpop.f32.mrf.mxu0
    %v709 = vadd.f32 %v564, %v708
    %v710 = vpop.f32.mrf.mxu0
    %711 = vmatprep.mubr.f32.mxu0 0.0
    %712 = vmatmul.mubr.f32.gmra.mxu0 %v410
    %v713 = vpop.f32.mrf.mxu0
    %v714 = vadd.f32 %v569, %v713
    %v715 = vpop.f32.mrf.mxu0
    %716 = vmatprep.mubr.f32.mxu0 0.0
    %717 = vmatmul.mubr.f32.gmra.mxu0 %v411
    %v718 = vpop.f32.mrf.mxu0
    %v719 = vadd.f32 %v574, %v718
    %v720 = vpop.f32.mrf.mxu0
    %721 = vmatprep.mubr.f32.mxu0 0.0
    %722 = vmatmul.mubr.f32.gmra.mxu0 %v412
    %v723 = vpop.f32.mrf.mxu0
    %v724 = vadd.f32 %v579, %v723
    %v725 = vpop.f32.mrf.mxu0
    %726 = vmatprep.mubr.f32.mxu0 0.0
    %727 = vmatmul.mubr.f32.gmra.mxu0 %v413
    %v728 = vpop.f32.mrf.mxu0
    %v729 = vadd.f32 %v584, %v728
    %v730 = vpop.f32.mrf.mxu0
    %731 = vmatprep.mubr.f32.mxu0 0.0
    %732 = vmatmul.mubr.f32.gmra.mxu0 %v414
    %v733 = vpop.f32.mrf.mxu0
    %v734 = vadd.f32 %v589, %v733
    %v735 = vpop.f32.mrf.mxu0
    %736 = vdwg.mxu0
    %v737 = vld [vmem:[#allocation7 + $0x281] sm:$0x1]
    %v738 = vlaneseq
    %v739 = vshrl.u32 %v738, 7
    %v740 = vsub.s32 0, %v739
    %v741 = vrot.slane %v737, %v740
    %742 = vmatprep.subr.mxu0 0.0
    %743 = vmatpush1.msra.mxu0 %v734
    %744 = vmatprep.subr.mxu0 0.0
    %745 = vmatpush1.msra.mxu0 %v729
    %746 = vmatprep.subr.mxu0 0.0
    %747 = vmatpush1.msra.mxu0 %v724
    %748 = vmatprep.subr.mxu0 0.0
    %749 = vmatpush1.msra.mxu0 %v719
    %750 = vmatprep.subr.mxu0 0.0
    %751 = vmatpush1.msra.mxu0 %v714
    %752 = vmatprep.subr.mxu0 0.0
    %753 = vmatpush1.msra.mxu0 %v709
    %754 = vmatprep.subr.mxu0 0.0
    %755 = vmatpush1.msra.mxu0 %v704
    %756 = vmatprep.subr.mxu0 0.0
    %757 = vmatpush1.msra.mxu0 %v699
    %758 = vmatprep.subr.mxu0 0.0
    %759 = vmatpush1.msra.mxu0 %v694
    %760 = vmatprep.subr.mxu0 0.0
    %761 = vmatpush1.msra.mxu0 %v689
    %762 = vmatprep.subr.mxu0 0.0
    %763 = vmatpush1.msra.mxu0 %v684
    %764 = vmatprep.subr.mxu0 0.0
    %765 = vmatpush1.msra.mxu0 %v679
    %766 = vmatprep.subr.mxu0 0.0
    %767 = vmatpush1.msra.mxu0 %v674
    %768 = vmatprep.subr.mxu0 0.0
    %769 = vmatpush1.msra.mxu0 %v669
    %770 = vmatprep.subr.mxu0 0.0
    %771 = vmatpush1.msra.mxu0 %v664
    %772 = vmatprep.subr.mxu0 0.0
    %773 = vmatpush1.msra.mxu0 %v659
    %774 = vmatprep.subr.mxu0 0.0
    %775 = vmatpush2.msra.mxu0 0.0
    %776 = vmatprep.subr.mxu0 0.0
    %777 = vmatpush2.msra.mxu0 0.0
    %778 = vmatprep.subr.mxu0 0.0
    %779 = vmatpush2.msra.mxu0 0.0
    %780 = vmatprep.subr.mxu0 0.0
    %781 = vmatpush2.msra.mxu0 0.0
    %782 = vmatprep.subr.mxu0 0.0
    %783 = vmatpush2.msra.mxu0 0.0
    %784 = vmatprep.subr.mxu0 0.0
    %785 = vmatpush2.msra.mxu0 0.0
    %786 = vmatprep.subr.mxu0 0.0
    %787 = vmatpush2.msra.mxu0 0.0
    %788 = vmatprep.subr.mxu0 0.0
    %789 = vmatpush2.msra.mxu0 0.0
    %790 = vmatprep.subr.mxu0 0.0
    %791 = vmatpush2.msra.mxu0 0.0
    %792 = vmatprep.subr.mxu0 0.0
    %793 = vmatpush2.msra.mxu0 0.0
    %794 = vmatprep.subr.mxu0 0.0
    %795 = vmatpush2.msra.mxu0 0.0
    %796 = vmatprep.subr.mxu0 0.0
    %797 = vmatpush2.msra.mxu0 0.0
    %798 = vmatprep.subr.mxu0 0.0
    %799 = vmatpush2.msra.mxu0 0.0
    %800 = vmatprep.subr.mxu0 0.0
    %801 = vmatpush2.msra.mxu0 0.0
    %802 = vmatprep.subr.mxu0 0.0
    %803 = vmatpush2.msra.mxu0 0.0
    %804 = vmatprep.subr.mxu0 0.0
    %805 = vmatpush2.msra.mxu0 0.0
    %806 = vmatprep.mubr.f32.mxu0 0.0
    %807 = vmatmul.mubr.f32.gmra.mxu0 %v56
    %v808 = vpop.f32.mrf.mxu0
    %v809 = vadd.f32 %v741, %v808
    %v810 = vpop.f32.mrf.mxu0
    %811 = vmatprep.mubr.f32.mxu0 0.0
    %812 = vmatmul.mubr.f32.gmra.mxu0 %v57
    %v813 = vpop.f32.mrf.mxu0
    %v814 = vadd.f32 %v741, %v813
    %v815 = vpop.f32.mrf.mxu0
    %816 = vmatprep.mubr.f32.mxu0 0.0
    %817 = vmatmul.mubr.f32.gmra.mxu0 %v58
    %v818 = vpop.f32.mrf.mxu0
    %v819 = vadd.f32 %v741, %v818
    %v820 = vpop.f32.mrf.mxu0
    %821 = vmatprep.mubr.f32.mxu0 0.0
    %822 = vmatmul.mubr.f32.gmra.mxu0 %v59
    %v823 = vpop.f32.mrf.mxu0
    %v824 = vadd.f32 %v741, %v823
    %v825 = vpop.f32.mrf.mxu0
    %826 = vmatprep.mubr.f32.mxu0 0.0
    %827 = vmatmul.mubr.f32.gmra.mxu0 %v60
    %v828 = vpop.f32.mrf.mxu0
    %v829 = vadd.f32 %v741, %v828
    %v830 = vpop.f32.mrf.mxu0
    %831 = vmatprep.mubr.f32.mxu0 0.0
    %832 = vmatmul.mubr.f32.gmra.mxu0 %v61
    %v833 = vpop.f32.mrf.mxu0
    %v834 = vadd.f32 %v741, %v833
    %v835 = vpop.f32.mrf.mxu0
    %836 = vmatprep.mubr.f32.mxu0 0.0
    %837 = vmatmul.mubr.f32.gmra.mxu0 %v62
    %v838 = vpop.f32.mrf.mxu0
    %v839 = vadd.f32 %v741, %v838
    %v840 = vpop.f32.mrf.mxu0
    %841 = vmatprep.mubr.f32.mxu0 0.0
    %842 = vmatmul.mubr.f32.gmra.mxu0 %v63
    %v843 = vpop.f32.mrf.mxu0
    %v844 = vadd.f32 %v741, %v843
    %v845 = vpop.f32.mrf.mxu0
    %846 = vmatprep.mubr.f32.mxu0 0.0
    %847 = vmatmul.mubr.f32.gmra.mxu0 %v64
    %v848 = vpop.f32.mrf.mxu0
    %v849 = vadd.f32 %v741, %v848
    %v850 = vpop.f32.mrf.mxu0
    %851 = vmatprep.mubr.f32.mxu0 0.0
    %852 = vmatmul.mubr.f32.gmra.mxu0 %v65
    %v853 = vpop.f32.mrf.mxu0
    %v854 = vadd.f32 %v741, %v853
    %v855 = vpop.f32.mrf.mxu0
    %856 = vmatprep.mubr.f32.mxu0 0.0
    %857 = vmatmul.mubr.f32.gmra.mxu0 %v66
    %v858 = vpop.f32.mrf.mxu0
    %v859 = vadd.f32 %v741, %v858
    %v860 = vpop.f32.mrf.mxu0
    %861 = vmatprep.mubr.f32.mxu0 0.0
    %862 = vmatmul.mubr.f32.gmra.mxu0 %v67
    %v863 = vpop.f32.mrf.mxu0
    %v864 = vadd.f32 %v741, %v863
    %v865 = vpop.f32.mrf.mxu0
    %866 = vmatprep.mubr.f32.mxu0 0.0
    %867 = vmatmul.mubr.f32.gmra.mxu0 %v68
    %v868 = vpop.f32.mrf.mxu0
    %v869 = vadd.f32 %v741, %v868
    %v870 = vpop.f32.mrf.mxu0
    %871 = vmatprep.mubr.f32.mxu0 0.0
    %872 = vmatmul.mubr.f32.gmra.mxu0 %v69
    %v873 = vpop.f32.mrf.mxu0
    %v874 = vadd.f32 %v741, %v873
    %v875 = vpop.f32.mrf.mxu0
    %876 = vmatprep.mubr.f32.mxu0 0.0
    %877 = vmatmul.mubr.f32.gmra.mxu0 %v70
    %v878 = vpop.f32.mrf.mxu0
    %v879 = vadd.f32 %v741, %v878
    %v880 = vpop.f32.mrf.mxu0
    %881 = vmatprep.mubr.f32.mxu0 0.0
    %882 = vmatmul.mubr.f32.gmra.mxu0 %v71
    %v883 = vpop.f32.mrf.mxu0
    %v884 = vadd.f32 %v741, %v883
    %v885 = vpop.f32.mrf.mxu0
    %886 = vdwg.mxu0
    %v887 = vmax.f32 %v809, 0.0
    %v888 = vmax.f32 %v814, 0.0
    %v889 = vmax.f32 %v819, 0.0
    %v890 = vmax.f32 %v824, 0.0
    %v891 = vmax.f32 %v829, 0.0
    %v892 = vmax.f32 %v834, 0.0
    %v893 = vmax.f32 %v839, 0.0
    %v894 = vmax.f32 %v844, 0.0
    %v895 = vmax.f32 %v849, 0.0
    %v896 = vmax.f32 %v854, 0.0
    %v897 = vmax.f32 %v859, 0.0
    %v898 = vmax.f32 %v864, 0.0
    %v899 = vmax.f32 %v869, 0.0
    %v900 = vmax.f32 %v874, 0.0
    %v901 = vmax.f32 %v879, 0.0
    %v902 = vmax.f32 %v884, 0.0
    %v903 = vld [vmem:[#allocation7 + $0x180] sm:$0xff]
    %v904 = vld [vmem:[#allocation7 + $0x188] sm:$0xff]
    %v905 = vld [vmem:[#allocation7 + $0x190] sm:$0xff]
    %v906 = vld [vmem:[#allocation7 + $0x198] sm:$0xff]
    %v907 = vld [vmem:[#allocation7 + $0x1a0] sm:$0xff]
    %v908 = vld [vmem:[#allocation7 + $0x1a8] sm:$0xff]
    %v909 = vld [vmem:[#allocation7 + $0x1b0] sm:$0xff]
    %v910 = vld [vmem:[#allocation7 + $0x1b8] sm:$0xff]
    %v911 = vld [vmem:[#allocation7 + $0x1c0] sm:$0xff]
    %v912 = vld [vmem:[#allocation7 + $0x1c8] sm:$0xff]
    %v913 = vld [vmem:[#allocation7 + $0x1d0] sm:$0xff]
    %v914 = vld [vmem:[#allocation7 + $0x1d8] sm:$0xff]
    %v915 = vld [vmem:[#allocation7 + $0x1e0] sm:$0xff]
    %v916 = vld [vmem:[#allocation7 + $0x1e8] sm:$0xff]
    %v917 = vld [vmem:[#allocation7 + $0x1f0] sm:$0xff]
    %v918 = vld [vmem:[#allocation7 + $0x1f8] sm:$0xff]
    %v919 = vld [vmem:[#allocation7 + $0x200] sm:$0xff]
    %v920 = vld [vmem:[#allocation7 + $0x208] sm:$0xff]
    %v921 = vld [vmem:[#allocation7 + $0x210] sm:$0xff]
    %v922 = vld [vmem:[#allocation7 + $0x218] sm:$0xff]
    %v923 = vld [vmem:[#allocation7 + $0x220] sm:$0xff]
    %v924 = vld [vmem:[#allocation7 + $0x228] sm:$0xff]
    %v925 = vld [vmem:[#allocation7 + $0x230] sm:$0xff]
    %v926 = vld [vmem:[#allocation7 + $0x238] sm:$0xff]
    %v927 = vld [vmem:[#allocation7 + $0x240] sm:$0xff]
    %v928 = vld [vmem:[#allocation7 + $0x248] sm:$0xff]
    %v929 = vld [vmem:[#allocation7 + $0x250] sm:$0xff]
    %v930 = vld [vmem:[#allocation7 + $0x258] sm:$0xff]
    %v931 = vld [vmem:[#allocation7 + $0x260] sm:$0xff]
    %v932 = vld [vmem:[#allocation7 + $0x268] sm:$0xff]
    %v933 = vld [vmem:[#allocation7 + $0x270] sm:$0xff]
    %v934 = vld [vmem:[#allocation7 + $0x278] sm:$0xff]
    %935 = vmatprep.subr.mxu0 0.0
    %936 = vmatpush1.msra.mxu0 %v934
    %937 = vmatprep.subr.mxu0 0.0
    %938 = vmatpush1.msra.mxu0 %v933
    %939 = vmatprep.subr.mxu0 0.0
    %940 = vmatpush1.msra.mxu0 %v932
    %941 = vmatprep.subr.mxu0 0.0
    %942 = vmatpush1.msra.mxu0 %v931
    %943 = vmatprep.subr.mxu0 0.0
    %944 = vmatpush1.msra.mxu0 %v930
    %945 = vmatprep.subr.mxu0 0.0
    %946 = vmatpush1.msra.mxu0 %v929
    %947 = vmatprep.subr.mxu0 0.0
    %948 = vmatpush1.msra.mxu0 %v928
    %949 = vmatprep.subr.mxu0 0.0
    %950 = vmatpush1.msra.mxu0 %v927
    %951 = vmatprep.subr.mxu0 0.0
    %952 = vmatpush1.msra.mxu0 %v926
    %953 = vmatprep.subr.mxu0 0.0
    %954 = vmatpush1.msra.mxu0 %v925
    %955 = vmatprep.subr.mxu0 0.0
    %956 = vmatpush1.msra.mxu0 %v924
    %957 = vmatprep.subr.mxu0 0.0
    %958 = vmatpush1.msra.mxu0 %v923
    %959 = vmatprep.subr.mxu0 0.0
    %960 = vmatpush1.msra.mxu0 %v922
    %961 = vmatprep.subr.mxu0 0.0
    %962 = vmatpush1.msra.mxu0 %v921
    %963 = vmatprep.subr.mxu0 0.0
    %964 = vmatpush1.msra.mxu0 %v920
    %965 = vmatprep.subr.mxu0 0.0
    %966 = vmatpush1.msra.mxu0 %v919
    %967 = vmatprep.subr.mxu0 0.0
    %968 = vmatpush2.msra.mxu0 0.0
    %969 = vmatprep.subr.mxu0 0.0
    %970 = vmatpush2.msra.mxu0 0.0
    %971 = vmatprep.subr.mxu0 0.0
    %972 = vmatpush2.msra.mxu0 0.0
    %973 = vmatprep.subr.mxu0 0.0
    %974 = vmatpush2.msra.mxu0 0.0
    %975 = vmatprep.subr.mxu0 0.0
    %976 = vmatpush2.msra.mxu0 0.0
    %977 = vmatprep.subr.mxu0 0.0
    %978 = vmatpush2.msra.mxu0 0.0
    %979 = vmatprep.subr.mxu0 0.0
    %980 = vmatpush2.msra.mxu0 0.0
    %981 = vmatprep.subr.mxu0 0.0
    %982 = vmatpush2.msra.mxu0 0.0
    %983 = vmatprep.subr.mxu0 0.0
    %984 = vmatpush2.msra.mxu0 0.0
    %985 = vmatprep.subr.mxu0 0.0
    %986 = vmatpush2.msra.mxu0 0.0
    %987 = vmatprep.subr.mxu0 0.0
    %988 = vmatpush2.msra.mxu0 0.0
    %989 = vmatprep.subr.mxu0 0.0
    %990 = vmatpush2.msra.mxu0 0.0
    %991 = vmatprep.subr.mxu0 0.0
    %992 = vmatpush2.msra.mxu0 0.0
    %993 = vmatprep.subr.mxu0 0.0
    %994 = vmatpush2.msra.mxu0 0.0
    %995 = vmatprep.subr.mxu0 0.0
    %996 = vmatpush2.msra.mxu0 0.0
    %997 = vmatprep.subr.mxu0 0.0
    %998 = vmatpush2.msra.mxu0 0.0
    %999 = vmatprep.mubr.f32.mxu0 0.0
    %1000 = vmatmul.mubr.f32.gmra.mxu0 %v809
    %v1001 = vpop.f32.mrf.mxu0
    %v1002 = vadd.f32 0.0, %v1001
    %v1003 = vpop.f32.mrf.mxu0
    %1004 = vmatprep.mubr.f32.mxu0 0.0
    %1005 = vmatmul.mubr.f32.gmra.mxu0 %v814
    %v1006 = vpop.f32.mrf.mxu0
    %v1007 = vadd.f32 0.0, %v1006
    %v1008 = vpop.f32.mrf.mxu0
    %1009 = vmatprep.mubr.f32.mxu0 0.0
    %1010 = vmatmul.mubr.f32.gmra.mxu0 %v819
    %v1011 = vpop.f32.mrf.mxu0
    %v1012 = vadd.f32 0.0, %v1011
    %v1013 = vpop.f32.mrf.mxu0
    %1014 = vmatprep.mubr.f32.mxu0 0.0
    %1015 = vmatmul.mubr.f32.gmra.mxu0 %v824
    %v1016 = vpop.f32.mrf.mxu0
    %v1017 = vadd.f32 0.0, %v1016
    %v1018 = vpop.f32.mrf.mxu0
    %1019 = vmatprep.mubr.f32.mxu0 0.0
    %1020 = vmatmul.mubr.f32.gmra.mxu0 %v829
    %v1021 = vpop.f32.mrf.mxu0
    %v1022 = vadd.f32 0.0, %v1021
    %v1023 = vpop.f32.mrf.mxu0
    %1024 = vmatprep.mubr.f32.mxu0 0.0
    %1025 = vmatmul.mubr.f32.gmra.mxu0 %v834
    %v1026 = vpop.f32.mrf.mxu0
    %v1027 = vadd.f32 0.0, %v1026
    %v1028 = vpop.f32.mrf.mxu0
    %1029 = vmatprep.mubr.f32.mxu0 0.0
    %1030 = vmatmul.mubr.f32.gmra.mxu0 %v839
    %v1031 = vpop.f32.mrf.mxu0
    %v1032 = vadd.f32 0.0, %v1031
    %v1033 = vpop.f32.mrf.mxu0
    %1034 = vmatprep.mubr.f32.mxu0 0.0
    %1035 = vmatmul.mubr.f32.gmra.mxu0 %v844
    %v1036 = vpop.f32.mrf.mxu0
    %v1037 = vadd.f32 0.0, %v1036
    %v1038 = vpop.f32.mrf.mxu0
    %1039 = vmatprep.mubr.f32.mxu0 0.0
    %1040 = vmatmul.mubr.f32.gmra.mxu0 %v849
    %v1041 = vpop.f32.mrf.mxu0
    %v1042 = vadd.f32 0.0, %v1041
    %v1043 = vpop.f32.mrf.mxu0
    %1044 = vmatprep.mubr.f32.mxu0 0.0
    %1045 = vmatmul.mubr.f32.gmra.mxu0 %v854
    %v1046 = vpop.f32.mrf.mxu0
    %v1047 = vadd.f32 0.0, %v1046
    %v1048 = vpop.f32.mrf.mxu0
    %1049 = vmatprep.mubr.f32.mxu0 0.0
    %1050 = vmatmul.mubr.f32.gmra.mxu0 %v859
    %v1051 = vpop.f32.mrf.mxu0
    %v1052 = vadd.f32 0.0, %v1051
    %v1053 = vpop.f32.mrf.mxu0
    %1054 = vmatprep.mubr.f32.mxu0 0.0
    %1055 = vmatmul.mubr.f32.gmra.mxu0 %v864
    %v1056 = vpop.f32.mrf.mxu0
    %v1057 = vadd.f32 0.0, %v1056
    %v1058 = vpop.f32.mrf.mxu0
    %1059 = vmatprep.mubr.f32.mxu0 0.0
    %1060 = vmatmul.mubr.f32.gmra.mxu0 %v869
    %v1061 = vpop.f32.mrf.mxu0
    %v1062 = vadd.f32 0.0, %v1061
    %v1063 = vpop.f32.mrf.mxu0
    %1064 = vmatprep.mubr.f32.mxu0 0.0
    %1065 = vmatmul.mubr.f32.gmra.mxu0 %v874
    %v1066 = vpop.f32.mrf.mxu0
    %v1067 = vadd.f32 0.0, %v1066
    %v1068 = vpop.f32.mrf.mxu0
    %1069 = vmatprep.mubr.f32.mxu0 0.0
    %1070 = vmatmul.mubr.f32.gmra.mxu0 %v879
    %v1071 = vpop.f32.mrf.mxu0
    %v1072 = vadd.f32 0.0, %v1071
    %v1073 = vpop.f32.mrf.mxu0
    %1074 = vmatprep.mubr.f32.mxu0 0.0
    %1075 = vmatmul.mubr.f32.gmra.mxu0 %v884
    %v1076 = vpop.f32.mrf.mxu0
    %v1077 = vadd.f32 0.0, %v1076
    %v1078 = vpop.f32.mrf.mxu0
    %1079 = vdwg.mxu0
    %1080 = vmatprep.subr.mxu0 0.0
    %1081 = vmatpush1.msra.mxu0 %v918
    %1082 = vmatprep.subr.mxu0 0.0
    %1083 = vmatpush1.msra.mxu0 %v917
    %1084 = vmatprep.subr.mxu0 0.0
    %1085 = vmatpush1.msra.mxu0 %v916
    %1086 = vmatprep.subr.mxu0 0.0
    %1087 = vmatpush1.msra.mxu0 %v915
    %1088 = vmatprep.subr.mxu0 0.0
    %1089 = vmatpush1.msra.mxu0 %v914
    %1090 = vmatprep.subr.mxu0 0.0
    %1091 = vmatpush1.msra.mxu0 %v913
    %1092 = vmatprep.subr.mxu0 0.0
    %1093 = vmatpush1.msra.mxu0 %v912
    %1094 = vmatprep.subr.mxu0 0.0
    %1095 = vmatpush1.msra.mxu0 %v911
    %1096 = vmatprep.subr.mxu0 0.0
    %1097 = vmatpush1.msra.mxu0 %v910
    %1098 = vmatprep.subr.mxu0 0.0
    %1099 = vmatpush1.msra.mxu0 %v909
    %1100 = vmatprep.subr.mxu0 0.0
    %1101 = vmatpush1.msra.mxu0 %v908
    %1102 = vmatprep.subr.mxu0 0.0
    %1103 = vmatpush1.msra.mxu0 %v907
    %1104 = vmatprep.subr.mxu0 0.0
    %1105 = vmatpush1.msra.mxu0 %v906
    %1106 = vmatprep.subr.mxu0 0.0
    %1107 = vmatpush1.msra.mxu0 %v905
    %1108 = vmatprep.subr.mxu0 0.0
    %1109 = vmatpush1.msra.mxu0 %v904
    %1110 = vmatprep.subr.mxu0 0.0
    %1111 = vmatpush1.msra.mxu0 %v903
    %1112 = vmatprep.subr.mxu0 0.0
    %1113 = vmatpush2.msra.mxu0 0.0
    %1114 = vmatprep.subr.mxu0 0.0
    %1115 = vmatpush2.msra.mxu0 0.0
    %1116 = vmatprep.subr.mxu0 0.0
    %1117 = vmatpush2.msra.mxu0 0.0
    %1118 = vmatprep.subr.mxu0 0.0
    %1119 = vmatpush2.msra.mxu0 0.0
    %1120 = vmatprep.subr.mxu0 0.0
    %1121 = vmatpush2.msra.mxu0 0.0
    %1122 = vmatprep.subr.mxu0 0.0
    %1123 = vmatpush2.msra.mxu0 0.0
    %1124 = vmatprep.subr.mxu0 0.0
    %1125 = vmatpush2.msra.mxu0 0.0
    %1126 = vmatprep.subr.mxu0 0.0
    %1127 = vmatpush2.msra.mxu0 0.0
    %1128 = vmatprep.subr.mxu0 0.0
    %1129 = vmatpush2.msra.mxu0 0.0
    %1130 = vmatprep.subr.mxu0 0.0
    %1131 = vmatpush2.msra.mxu0 0.0
    %1132 = vmatprep.subr.mxu0 0.0
    %1133 = vmatpush2.msra.mxu0 0.0
    %1134 = vmatprep.subr.mxu0 0.0
    %1135 = vmatpush2.msra.mxu0 0.0
    %1136 = vmatprep.subr.mxu0 0.0
    %1137 = vmatpush2.msra.mxu0 0.0
    %1138 = vmatprep.subr.mxu0 0.0
    %1139 = vmatpush2.msra.mxu0 0.0
    %1140 = vmatprep.subr.mxu0 0.0
    %1141 = vmatpush2.msra.mxu0 0.0
    %1142 = vmatprep.subr.mxu0 0.0
    %1143 = vmatpush2.msra.mxu0 0.0
    %1144 = vmatprep.mubr.f32.mxu0 0.0
    %1145 = vmatmul.mubr.f32.gmra.mxu0 %v887
    %v1146 = vpop.f32.mrf.mxu0
    %v1147 = vadd.f32 %v1002, %v1146
    %v1148 = vpop.f32.mrf.mxu0
    %1149 = vmatprep.mubr.f32.mxu0 0.0
    %1150 = vmatmul.mubr.f32.gmra.mxu0 %v888
    %v1151 = vpop.f32.mrf.mxu0
    %v1152 = vadd.f32 %v1007, %v1151
    %v1153 = vpop.f32.mrf.mxu0
    %1154 = vmatprep.mubr.f32.mxu0 0.0
    %1155 = vmatmul.mubr.f32.gmra.mxu0 %v889
    %v1156 = vpop.f32.mrf.mxu0
    %v1157 = vadd.f32 %v1012, %v1156
    %v1158 = vpop.f32.mrf.mxu0
    %1159 = vmatprep.mubr.f32.mxu0 0.0
    %1160 = vmatmul.mubr.f32.gmra.mxu0 %v890
    %v1161 = vpop.f32.mrf.mxu0
    %v1162 = vadd.f32 %v1017, %v1161
    %v1163 = vpop.f32.mrf.mxu0
    %1164 = vmatprep.mubr.f32.mxu0 0.0
    %1165 = vmatmul.mubr.f32.gmra.mxu0 %v891
    %v1166 = vpop.f32.mrf.mxu0
    %v1167 = vadd.f32 %v1022, %v1166
    %v1168 = vpop.f32.mrf.mxu0
    %1169 = vmatprep.mubr.f32.mxu0 0.0
    %1170 = vmatmul.mubr.f32.gmra.mxu0 %v892
    %v1171 = vpop.f32.mrf.mxu0
    %v1172 = vadd.f32 %v1027, %v1171
    %v1173 = vpop.f32.mrf.mxu0
    %1174 = vmatprep.mubr.f32.mxu0 0.0
    %1175 = vmatmul.mubr.f32.gmra.mxu0 %v893
    %v1176 = vpop.f32.mrf.mxu0
    %v1177 = vadd.f32 %v1032, %v1176
    %v1178 = vpop.f32.mrf.mxu0
    %1179 = vmatprep.mubr.f32.mxu0 0.0
    %1180 = vmatmul.mubr.f32.gmra.mxu0 %v894
    %v1181 = vpop.f32.mrf.mxu0
    %v1182 = vadd.f32 %v1037, %v1181
    %v1183 = vpop.f32.mrf.mxu0
    %1184 = vmatprep.mubr.f32.mxu0 0.0
    %1185 = vmatmul.mubr.f32.gmra.mxu0 %v895
    %v1186 = vpop.f32.mrf.mxu0
    %v1187 = vadd.f32 %v1042, %v1186
    %v1188 = vpop.f32.mrf.mxu0
    %1189 = vmatprep.mubr.f32.mxu0 0.0
    %1190 = vmatmul.mubr.f32.gmra.mxu0 %v896
    %v1191 = vpop.f32.mrf.mxu0
    %v1192 = vadd.f32 %v1047, %v1191
    %v1193 = vpop.f32.mrf.mxu0
    %1194 = vmatprep.mubr.f32.mxu0 0.0
    %1195 = vmatmul.mubr.f32.gmra.mxu0 %v897
    %v1196 = vpop.f32.mrf.mxu0
    %v1197 = vadd.f32 %v1052, %v1196
    %v1198 = vpop.f32.mrf.mxu0
    %1199 = vmatprep.mubr.f32.mxu0 0.0
    %1200 = vmatmul.mubr.f32.gmra.mxu0 %v898
    %v1201 = vpop.f32.mrf.mxu0
    %v1202 = vadd.f32 %v1057, %v1201
    %v1203 = vpop.f32.mrf.mxu0
    %1204 = vmatprep.mubr.f32.mxu0 0.0
    %1205 = vmatmul.mubr.f32.gmra.mxu0 %v899
    %v1206 = vpop.f32.mrf.mxu0
    %v1207 = vadd.f32 %v1062, %v1206
    %v1208 = vpop.f32.mrf.mxu0
    %1209 = vmatprep.mubr.f32.mxu0 0.0
    %1210 = vmatmul.mubr.f32.gmra.mxu0 %v900
    %v1211 = vpop.f32.mrf.mxu0
    %v1212 = vadd.f32 %v1067, %v1211
    %v1213 = vpop.f32.mrf.mxu0
    %1214 = vmatprep.mubr.f32.mxu0 0.0
    %1215 = vmatmul.mubr.f32.gmra.mxu0 %v901
    %v1216 = vpop.f32.mrf.mxu0
    %v1217 = vadd.f32 %v1072, %v1216
    %v1218 = vpop.f32.mrf.mxu0
    %1219 = vmatprep.mubr.f32.mxu0 0.0
    %1220 = vmatmul.mubr.f32.gmra.mxu0 %v902
    %v1221 = vpop.f32.mrf.mxu0
    %v1222 = vadd.f32 %v1077, %v1221
    %v1223 = vpop.f32.mrf.mxu0
    %1224 = vdwg.mxu0
    %v1225 = vld [vmem:[#allocation7 + $0x282] sm:$0x1]
    %v1226 = vlaneseq
    %v1227 = vshrl.u32 %v1226, 7
    %v1228 = vsub.s32 0, %v1227
    %v1229 = vrot.slane %v1225, %v1228
    %1230 = vmatprep.subr.mxu0 0.0
    %1231 = vmatpush1.msra.mxu0 %v1222
    %1232 = vmatprep.subr.mxu0 0.0
    %1233 = vmatpush1.msra.mxu0 %v1217
    %1234 = vmatprep.subr.mxu0 0.0
    %1235 = vmatpush1.msra.mxu0 %v1212
    %1236 = vmatprep.subr.mxu0 0.0
    %1237 = vmatpush1.msra.mxu0 %v1207
    %1238 = vmatprep.subr.mxu0 0.0
    %1239 = vmatpush1.msra.mxu0 %v1202
    %1240 = vmatprep.subr.mxu0 0.0
    %1241 = vmatpush1.msra.mxu0 %v1197
    %1242 = vmatprep.subr.mxu0 0.0
    %1243 = vmatpush1.msra.mxu0 %v1192
    %1244 = vmatprep.subr.mxu0 0.0
    %1245 = vmatpush1.msra.mxu0 %v1187
    %1246 = vmatprep.subr.mxu0 0.0
    %1247 = vmatpush1.msra.mxu0 %v1182
    %1248 = vmatprep.subr.mxu0 0.0
    %1249 = vmatpush1.msra.mxu0 %v1177
    %1250 = vmatprep.subr.mxu0 0.0
    %1251 = vmatpush1.msra.mxu0 %v1172
    %1252 = vmatprep.subr.mxu0 0.0
    %1253 = vmatpush1.msra.mxu0 %v1167
    %1254 = vmatprep.subr.mxu0 0.0
    %1255 = vmatpush1.msra.mxu0 %v1162
    %1256 = vmatprep.subr.mxu0 0.0
    %1257 = vmatpush1.msra.mxu0 %v1157
    %1258 = vmatprep.subr.mxu0 0.0
    %1259 = vmatpush1.msra.mxu0 %v1152
    %1260 = vmatprep.subr.mxu0 0.0
    %1261 = vmatpush1.msra.mxu0 %v1147
    %1262 = vmatprep.subr.mxu0 0.0
    %1263 = vmatpush2.msra.mxu0 0.0
    %1264 = vmatprep.subr.mxu0 0.0
    %1265 = vmatpush2.msra.mxu0 0.0
    %1266 = vmatprep.subr.mxu0 0.0
    %1267 = vmatpush2.msra.mxu0 0.0
    %1268 = vmatprep.subr.mxu0 0.0
    %1269 = vmatpush2.msra.mxu0 0.0
    %1270 = vmatprep.subr.mxu0 0.0
    %1271 = vmatpush2.msra.mxu0 0.0
    %1272 = vmatprep.subr.mxu0 0.0
    %1273 = vmatpush2.msra.mxu0 0.0
    %1274 = vmatprep.subr.mxu0 0.0
    %1275 = vmatpush2.msra.mxu0 0.0
    %1276 = vmatprep.subr.mxu0 0.0
    %1277 = vmatpush2.msra.mxu0 0.0
    %1278 = vmatprep.subr.mxu0 0.0
    %1279 = vmatpush2.msra.mxu0 0.0
    %1280 = vmatprep.subr.mxu0 0.0
    %1281 = vmatpush2.msra.mxu0 0.0
    %1282 = vmatprep.subr.mxu0 0.0
    %1283 = vmatpush2.msra.mxu0 0.0
    %1284 = vmatprep.subr.mxu0 0.0
    %1285 = vmatpush2.msra.mxu0 0.0
    %1286 = vmatprep.subr.mxu0 0.0
    %1287 = vmatpush2.msra.mxu0 0.0
    %1288 = vmatprep.subr.mxu0 0.0
    %1289 = vmatpush2.msra.mxu0 0.0
    %1290 = vmatprep.subr.mxu0 0.0
    %1291 = vmatpush2.msra.mxu0 0.0
    %1292 = vmatprep.subr.mxu0 0.0
    %1293 = vmatpush2.msra.mxu0 0.0
    %1294 = vmatprep.mubr.f32.mxu0 0.0
    %1295 = vmatmul.mubr.f32.gmra.mxu0 %v56
    %v1296 = vpop.f32.mrf.mxu0
    %v1297 = vadd.f32 %v1229, %v1296
    %v1298 = vpop.f32.mrf.mxu0
    %1299 = vmatprep.mubr.f32.mxu0 0.0
    %1300 = vmatmul.mubr.f32.gmra.mxu0 %v57
    %v1301 = vpop.f32.mrf.mxu0
    %v1302 = vadd.f32 %v1229, %v1301
    %v1303 = vpop.f32.mrf.mxu0
    %1304 = vmatprep.mubr.f32.mxu0 0.0
    %1305 = vmatmul.mubr.f32.gmra.mxu0 %v58
    %v1306 = vpop.f32.mrf.mxu0
    %v1307 = vadd.f32 %v1229, %v1306
    %v1308 = vpop.f32.mrf.mxu0
    %1309 = vmatprep.mubr.f32.mxu0 0.0
    %1310 = vmatmul.mubr.f32.gmra.mxu0 %v59
    %v1311 = vpop.f32.mrf.mxu0
    %v1312 = vadd.f32 %v1229, %v1311
    %v1313 = vpop.f32.mrf.mxu0
    %1314 = vmatprep.mubr.f32.mxu0 0.0
    %1315 = vmatmul.mubr.f32.gmra.mxu0 %v60
    %v1316 = vpop.f32.mrf.mxu0
    %v1317 = vadd.f32 %v1229, %v1316
    %v1318 = vpop.f32.mrf.mxu0
    %1319 = vmatprep.mubr.f32.mxu0 0.0
    %1320 = vmatmul.mubr.f32.gmra.mxu0 %v61
    %v1321 = vpop.f32.mrf.mxu0
    %v1322 = vadd.f32 %v1229, %v1321
    %v1323 = vpop.f32.mrf.mxu0
    %1324 = vmatprep.mubr.f32.mxu0 0.0
    %1325 = vmatmul.mubr.f32.gmra.mxu0 %v62
    %v1326 = vpop.f32.mrf.mxu0
    %v1327 = vadd.f32 %v1229, %v1326
    %v1328 = vpop.f32.mrf.mxu0
    %1329 = vmatprep.mubr.f32.mxu0 0.0
    %1330 = vmatmul.mubr.f32.gmra.mxu0 %v63
    %v1331 = vpop.f32.mrf.mxu0
    %v1332 = vadd.f32 %v1229, %v1331
    %v1333 = vpop.f32.mrf.mxu0
    %1334 = vmatprep.mubr.f32.mxu0 0.0
    %1335 = vmatmul.mubr.f32.gmra.mxu0 %v64
    %v1336 = vpop.f32.mrf.mxu0
    %v1337 = vadd.f32 %v1229, %v1336
    %v1338 = vpop.f32.mrf.mxu0
    %1339 = vmatprep.mubr.f32.mxu0 0.0
    %1340 = vmatmul.mubr.f32.gmra.mxu0 %v65
    %v1341 = vpop.f32.mrf.mxu0
    %v1342 = vadd.f32 %v1229, %v1341
    %v1343 = vpop.f32.mrf.mxu0
    %1344 = vmatprep.mubr.f32.mxu0 0.0
    %1345 = vmatmul.mubr.f32.gmra.mxu0 %v66
    %v1346 = vpop.f32.mrf.mxu0
    %v1347 = vadd.f32 %v1229, %v1346
    %v1348 = vpop.f32.mrf.mxu0
    %1349 = vmatprep.mubr.f32.mxu0 0.0
    %1350 = vmatmul.mubr.f32.gmra.mxu0 %v67
    %v1351 = vpop.f32.mrf.mxu0
    %v1352 = vadd.f32 %v1229, %v1351
    %v1353 = vpop.f32.mrf.mxu0
    %1354 = vmatprep.mubr.f32.mxu0 0.0
    %1355 = vmatmul.mubr.f32.gmra.mxu0 %v68
    %v1356 = vpop.f32.mrf.mxu0
    %v1357 = vadd.f32 %v1229, %v1356
    %v1358 = vpop.f32.mrf.mxu0
    %1359 = vmatprep.mubr.f32.mxu0 0.0
    %1360 = vmatmul.mubr.f32.gmra.mxu0 %v69
    %v1361 = vpop.f32.mrf.mxu0
    %v1362 = vadd.f32 %v1229, %v1361
    %v1363 = vpop.f32.mrf.mxu0
    %1364 = vmatprep.mubr.f32.mxu0 0.0
    %1365 = vmatmul.mubr.f32.gmra.mxu0 %v70
    %v1366 = vpop.f32.mrf.mxu0
    %v1367 = vadd.f32 %v1229, %v1366
    %v1368 = vpop.f32.mrf.mxu0
    %1369 = vmatprep.mubr.f32.mxu0 0.0
    %1370 = vmatmul.mubr.f32.gmra.mxu0 %v71
    %v1371 = vpop.f32.mrf.mxu0
    %v1372 = vadd.f32 %v1229, %v1371
    %v1373 = vpop.f32.mrf.mxu0
    %1374 = vdwg.mxu0
    %1375 = vst [vmem:[#allocation8] sm:$0xff] %v1297
    %1376 = vst [vmem:[#allocation8 + $0x8] sm:$0xff] %v1302
    %1377 = vst [vmem:[#allocation8 + $0x10] sm:$0xff] %v1307
    %1378 = vst [vmem:[#allocation8 + $0x18] sm:$0xff] %v1312
    %1379 = vst [vmem:[#allocation8 + $0x20] sm:$0xff] %v1317
    %1380 = vst [vmem:[#allocation8 + $0x28] sm:$0xff] %v1322
    %1381 = vst [vmem:[#allocation8 + $0x30] sm:$0xff] %v1327
    %1382 = vst [vmem:[#allocation8 + $0x38] sm:$0xff] %v1332
    %1383 = vst [vmem:[#allocation8 + $0x40] sm:$0xff] %v1337
    %1384 = vst [vmem:[#allocation8 + $0x48] sm:$0xff] %v1342
    %1385 = vst [vmem:[#allocation8 + $0x50] sm:$0xff] %v1347
    %1386 = vst [vmem:[#allocation8 + $0x58] sm:$0xff] %v1352
    %1387 = vst [vmem:[#allocation8 + $0x60] sm:$0xff] %v1357
    %1388 = vst [vmem:[#allocation8 + $0x68] sm:$0xff] %v1362
    %1389 = vst [vmem:[#allocation8 + $0x70] sm:$0xff] %v1367
    %1390 = vst [vmem:[#allocation8 + $0x78] sm:$0xff] %v1372
    // Predicated region
    $region26: #{tpu_custom_call.1} parent=1 // pred_check
      _
    $region27: #{tpu_custom_call.1} parent=1 // pred_check_branch
      %1392 = sbr.rel (0) target = $region29
    $region28: #{tpu_custom_call.1} parent=1 // pred_region
      %s1394 = ssub.s32 2048, 2048
      %1395 = vsyncadd [#allocation4], %s1394
      %s1396 = sshll.u32 [#allocation8], 4
      %s1397 = int_to_ptr.vmem [resolvable:$true] %s1396
      %1402 = dma.vmem_to_hbm [thread:$0]  %s1397, 2048, %s3, [#allocation4], 128, 128, 8
    $region29: #{tpu_custom_call.1} parent=1 // pred_fallthru
      _
    // Predicated region
    $region30: #{tpu_custom_call.1} parent=1 // pred_check
      _
    $region31: #{tpu_custom_call.1} parent=1 // pred_check_branch
      %1404 = sbr.rel (0) target = $region33
    $region32: #{tpu_custom_call.1} parent=1 // pred_region
      %1405 = dma.done [#allocation4], 2048
    $region33: #{tpu_custom_call.1} parent=1 // pred_fallthru
      _
    %1406 = vsyncpa [#allocation3], 1
    %1407 = vsyncpa [#allocation6], 1
    %1408 = vsyncpa [#allocation4], 1

</llo_original>
